<compile_context>
chip_gen: v6e
topology: v6e:2x2x1
jax: 0.10.0
libtpu: 0.0.40
codegen_flags: <defaults>
</compile_context>

<pallas_src>
import functools

import jax
import jax.numpy as jnp
from jax.experimental import pallas as pl
from jax.experimental.pallas import tpu as pltpu

KH = KW = 3
EPS = 1e-5  # nn.BatchNorm2d default eps


# ---------------------------------------------------------------------------
# Pass 1: conv(3x3, pad=1), plus per-tile per-channel BN partial stats.
# ---------------------------------------------------------------------------
def conv_stats_kernel(xp_ref, w_ref, y_ref, stat_ref):
    # xp_ref:   (Cin, H+2, W+2)  bf16  whole padded image for batch n (resident)
    # w_ref:    (Cout, 9*Cin)    bf16  weights, columns ordered (kh, kw, cin) (resident)
    # y_ref:    (Cout, TH*W)     bf16  conv output tile (lane-dense spatial axis)
    # stat_ref: (Cout, 2)        f32   per-tile [sum, sum-of-squares]
    cin, _, wp = xp_ref.shape
    w_out = wp - 2
    _, s = y_ref.shape
    th = s // w_out

    t = pl.program_id(1)
    row0 = t * th
    if th % 8 == 0:                       # static check; sublane-aligned window start
        row0 = pl.multiple_of(row0, 8)

    # One dynamic-offset load of the (TH+2)-row halo window, then static im2col
    # slicing of the loaded value: 9 shifted taps stacked along the K axis.
    xw = xp_ref[:, pl.ds(row0, th + 2), :]                # (Cin, TH+2, W+2) bf16
    taps = [xw[:, kh:kh + th, kw:kw + w_out]
            for kh in range(KH) for kw in range(KW)]      # 9 x (Cin, TH, W)
    patch = jnp.concatenate(taps, axis=0).reshape(KH * KW * cin, th * w_out)

    # Single MXU matmul: bf16 operands, f32 accumulation.
    conv = jnp.dot(w_ref[...], patch, preferred_element_type=jnp.float32)

    y_ref[...] = conv.astype(y_ref.dtype)                 # bf16 store (halves HBM traffic)
    # BN training-stat partials, taken from the f32 accumulator before the downcast.
    stat_ref[...] = jnp.concatenate(
        [jnp.sum(conv, axis=1, keepdims=True),
         jnp.sum(conv * conv, axis=1, keepdims=True)], axis=1)


# ---------------------------------------------------------------------------
# Pass 2: y * scale + shift, ReLU (pure streaming epilogue, big lane-dense blocks).
# ---------------------------------------------------------------------------
def bn_relu_kernel(y_ref, scale_ref, shift_ref, o_ref):
    y = y_ref[...].astype(jnp.float32)
    o_ref[...] = jnp.maximum(y * scale_ref[...] + shift_ref[...], 0.0)


# ---------------------------------------------------------------------------
# Sizing helpers (generation-aware VMEM budget).
# ---------------------------------------------------------------------------
@functools.lru_cache(maxsize=None)
def _vmem_budgets():
    """(vmem_limit_bytes for Mosaic, working-set budget for the tile pickers)."""
    try:
        phys = pltpu.get_tpu_info().vmem_capacity_bytes
    except Exception:
        phys = 64 * 1024 * 1024            # be conservative: v7x physical VMEM
    # ~48 MiB on v7x (64 MiB physical), 96-100 MiB on v5e/v6e (128 MiB physical).
    vmem_limit = min(phys * 3 // 4, 100 * 1024 * 1024)
    # The pickers' accounting of compiler temporaries is approximate -> 3x headroom.
    return int(vmem_limit), int(vmem_limit) // 3


def _pick_tile_h(H, W, cin, cout, budget_bytes):
    """Largest row tile TH (divides H, TH*W % 128 == 0) whose pass-1 working set
    fits the budget: resident padded input + weights (double-buffered), bf16 y tile
    (double-buffered), the in-kernel halo window, im2col taps/patch and the f32
    conv / conv^2 temporaries."""
    hp, wp = H + 2, W + 2
    resident = 2 * cin * hp * wp * 2 + 2 * cout * 9 * cin * 2
    best = 0
    th = 8
    while th <= H:
        if H % th == 0 and (th * W) % 128 == 0:
            s = th * W
            work = (resident
                    + 2 * cout * s * 2            # bf16 y tile (double-buffered)
                    + cin * (th + 2) * wp * 2     # in-kernel halo window copy
                    + 2 * 9 * cin * s * 2         # im2col taps + packed patch (bf16)
                    + 2 * cout * s * 4)           # f32 conv and conv*conv temporaries
            if work <= budget_bytes:
                best = th
        th += 8
    return best if best > 0 else H


def _pick_spatial_block(hw, nc, budget_bytes):
    """Largest multiple-of-128 divisor of hw so the (nc, sblk) pass-2 block
    (bf16 in + f32 out, double-buffered) stays within budget."""
    per_col = nc * (2 + 4) * 2
    best = 0
    s = 128
    while s <= hw:
        if hw % s == 0 and s * per_col <= budget_bytes:
            best = s
        s += 128
    if best == 0:
        best = 128 if hw % 128 == 0 else hw   # full-extent block is always legal
    return best


# ---------------------------------------------------------------------------
# Forward wrapper.
# ---------------------------------------------------------------------------
@functools.partial(jax.jit, static_argnames=("tile_h",))
def conv_block_forward(x_nchw, w_oihw, bias, gamma, beta, *, tile_h=None):
    """Equivalent of conv_block(in_size, out_size, kernal=3, stride=1, activate=True).forward.

    NOTE: `bias` is intentionally unused inside the kernels.  BatchNorm2d in training
    mode subtracts the batch mean, which absorbs a per-channel conv bias exactly, so
    the forward output is mathematically unchanged (checked against the reference,
    which does include the bias).  Only running_mean (not emitted) would see it.
    """
    del bias
    N, Cin, H, W = x_nchw.shape
    Cout = w_oihw.shape[0]
    HW = H * W

    vmem_limit, ws_budget = _vmem_budgets()
    TH = tile_h if tile_h is not None else _pick_tile_h(H, W, Cin, Cout, ws_budget)
    assert H % TH == 0, "tile height must divide H"
    nT = H // TH

    # Channels-first end to end.  Cast to bf16 FIRST, then zero-pad H/W by 1.
    xp = jnp.pad(x_nchw.astype(jnp.bfloat16), ((0, 0), (0, 0), (1, 1), (1, 1)))

    # (Cout, Cin, 3, 3) -> (Cout, 9*Cin) with columns ordered (kh, kw, cin).
    w2 = jnp.transpose(w_oihw, (0, 2, 3, 1)).reshape(Cout, KH * KW * Cin)
    w2 = w2.astype(jnp.bfloat16)

    # ---- Pass 1: conv + per-tile BN partial stats --------------------------
    y, stats = pl.pallas_call(
        conv_stats_kernel,
        grid=(N, nT),
        in_specs=[
            # Whole padded image of batch n, resident across all row tiles.
            pl.BlockSpec((None, Cin, H + 2, W + 2), lambda n, t: (n, 0, 0, 0)),
            pl.BlockSpec((Cout, KH * KW * Cin), lambda n, t: (0, 0)),
        ],
        out_specs=(
            pl.BlockSpec((None, Cout, TH * W), lambda n, t: (n, 0, t)),
            pl.BlockSpec((None, None, Cout, 2), lambda n, t: (n, t, 0, 0)),
        ),
        out_shape=(
            jax.ShapeDtypeStruct((N, Cout, HW), jnp.bfloat16),
            jax.ShapeDtypeStruct((N, nT, Cout, 2), jnp.float32),
        ),
        compiler_params=pltpu.CompilerParams(
            dimension_semantics=("parallel", "parallel"),
            vmem_limit_bytes=vmem_limit),
    )(xp, w2)

    # ---- Fold BN train-mode stats (biased variance) into scale/shift -------
    # Two-level (per-tile-centered) variance combine: numerically safer than a
    # single global E[x^2] - E[x]^2.
    c = float(TH * W)                       # elements per tile (per channel)
    cnt = float(N * H * W)                  # total elements per channel
    tile_sum = stats[..., 0]                # (N, nT, Cout)
    tile_ssq = stats[..., 1]                # (N, nT, Cout)
    mean = jnp.sum(tile_sum, axis=(0, 1)) / cnt                     # (Cout,)
    tile_mean = tile_sum / c
    m2 = (jnp.sum(tile_ssq - tile_sum * tile_mean, axis=(0, 1))
          + c * jnp.sum((tile_mean - mean) ** 2, axis=(0, 1)))
    var = jnp.maximum(m2 / cnt, 0.0)
    scale = gamma.astype(jnp.float32) * jax.lax.rsqrt(var + EPS)    # (Cout,)
    shift = beta.astype(jnp.float32) - mean * scale                 # (Cout,)

    # ---- Pass 2: normalize + ReLU as a big-block streaming epilogue --------
    NC = N * Cout
    SBLK = _pick_spatial_block(HW, NC, ws_budget)
    y2 = y.reshape(NC, HW)                                          # metadata reshape
    scale2 = jnp.broadcast_to(scale[None, :], (N, Cout)).reshape(NC, 1)
    shift2 = jnp.broadcast_to(shift[None, :], (N, Cout)).reshape(NC, 1)

    out = pl.pallas_call(
        bn_relu_kernel,
        grid=(HW // SBLK,),
        in_specs=[
            pl.BlockSpec((NC, SBLK), lambda s: (0, s)),
            pl.BlockSpec((NC, 1), lambda s: (0, 0)),
            pl.BlockSpec((NC, 1), lambda s: (0, 0)),
        ],
        out_specs=pl.BlockSpec((NC, SBLK), lambda s: (0, s)),
        out_shape=jax.ShapeDtypeStruct((NC, HW), jnp.float32),
        compiler_params=pltpu.CompilerParams(
            dimension_semantics=("parallel",),
            vmem_limit_bytes=vmem_limit),
    )(y2, scale2, shift2)

    return out.reshape(N, Cout, H, W)       # free metadata reshape back to NCHW


# ---------------------------------------------------------------------------
# Pure-JAX reference (same semantics as the PyTorch module in train mode).
# ---------------------------------------------------------------------------
def reference_forward(x, w, b, gamma, beta):
    y = jax.lax.conv_general_dilated(
        x, w, window_strides=(1, 1), padding=((1, 1), (1, 1)),
        dimension_numbers=('NCHW', 'OIHW', 'NCHW'),
        precision=jax.lax.Precision.HIGHEST)
    y = y + b.reshape(1, -1, 1, 1)
    mean = jnp.mean(y, axis=(0, 2, 3), keepdims=True)
    var = jnp.mean((y - mean) ** 2, axis=(0, 2, 3), keepdims=True)
    y = (y - mean) * jax.lax.rsqrt(var + EPS) * gamma.reshape(1, -1, 1, 1) \
        + beta.reshape(1, -1, 1, 1)
    return jnp.maximum(y, 0.0)


if __name__ == "__main__":
    # Small shapes consistent with the module: conv_block(in_size=4, out_size=8)
    N, Cin, Cout, H, W = 2, 4, 8, 16, 16

    key = jax.random.PRNGKey(0)
    kx, kw_, kb, kg, kbe = jax.random.split(key, 5)

    x = jax.random.normal(kx, (N, Cin, H, W), dtype=jnp.float32)
    w = 0.1 * jax.random.normal(kw_, (Cout, Cin, KH, KW), dtype=jnp.float32)
    b = 0.1 * jax.random.normal(kb, (Cout,), dtype=jnp.float32)
    gamma = 1.0 + 0.1 * jax.random.normal(kg, (Cout,), dtype=jnp.float32)
    beta = 0.1 * jax.random.normal(kbe, (Cout,), dtype=jnp.float32)

    ref = jax.block_until_ready(reference_forward(x, w, b, gamma, beta))

    # Default tile and an explicit multi-tile run (exercises the t>0 halo window
    # path and the cross-tile BN-stat combine).
    out = jax.block_until_ready(conv_block_forward(x, w, b, gamma, beta))
    out_tiled = jax.block_until_ready(
        conv_block_forward(x, w, b, gamma, beta, tile_h=8))

    assert out.shape == (N, Cout, H, W)
    # bf16 MXU operands + bf16 conv intermediate (f32 accumulation) -> 2e-2 tol.
    assert jnp.allclose(out, ref, rtol=2e-2, atol=2e-2), "mismatch vs reference"
    assert jnp.allclose(out_tiled, ref, rtol=2e-2, atol=2e-2), "mismatch (tiled) vs reference"

    print("KERNEL_OK")
</pallas_src>

<mosaic_0001>
module attributes {stable_mosaic.version = 11 : i64} {
  func.func @conv_stats_kernel(%arg0: i32, %arg1: i32, %arg2: memref<1x4x18x18xbf16, #tpu.memory_space<vmem>>, %arg3: memref<8x36xbf16, #tpu.memory_space<vmem>>, %arg4: memref<1x8x256xbf16, #tpu.memory_space<vmem>>, %arg5: memref<1x1x8x2xf32, #tpu.memory_space<vmem>>) attributes {dimension_semantics = [#tpu.dimension_semantics<parallel>, #tpu.dimension_semantics<parallel>], iteration_bounds = array<i64: 2, 1>, scalar_prefetch = 0 : i64, scratch_operands = 0 : i64, tpu.core_type = #tpu.core_type<tc>, window_params = [{transform_indices = @transform_0, window_bounds = array<i64: 1, 4, 18, 18>}, {pipeline_mode = #tpu.pipeline_mode<synchronous>, transform_indices = @transform_1, window_bounds = array<i64: 8, 36>}, {transform_indices = @transform_2, window_bounds = array<i64: 1, 8, 256>}, {transform_indices = @transform_3, window_bounds = array<i64: 1, 1, 8, 2>}]} {
    %c16_i32 = arith.constant 16 : i32
    %0 = arith.muli %arg1, %c16_i32 : i32
    %1 = tpu.assume_multiple %0, 8 : i32
    %c0 = arith.constant 0 : index
    %c0_0 = arith.constant 0 : index
    %2 = arith.index_cast %1 : i32 to index
    %c0_1 = arith.constant 0 : index
    %3 = vector.load %arg2[%c0, %c0_0, %2, %c0_1] : memref<1x4x18x18xbf16, #tpu.memory_space<vmem>>, vector<1x4x18x18xbf16>
    %4 = vector.shape_cast %3 : vector<1x4x18x18xbf16> to vector<4x18x18xbf16>
    %5 = vector.extract_strided_slice %4 {offsets = [0, 0, 0], sizes = [4, 16, 16], strides = [1, 1, 1]} : vector<4x18x18xbf16> to vector<4x16x16xbf16>
    %6 = vector.extract_strided_slice %4 {offsets = [0, 0, 1], sizes = [4, 16, 16], strides = [1, 1, 1]} : vector<4x18x18xbf16> to vector<4x16x16xbf16>
    %7 = vector.extract_strided_slice %4 {offsets = [0, 0, 2], sizes = [4, 16, 16], strides = [1, 1, 1]} : vector<4x18x18xbf16> to vector<4x16x16xbf16>
    %8 = vector.extract_strided_slice %4 {offsets = [0, 1, 0], sizes = [4, 16, 16], strides = [1, 1, 1]} : vector<4x18x18xbf16> to vector<4x16x16xbf16>
    %9 = vector.extract_strided_slice %4 {offsets = [0, 1, 1], sizes = [4, 16, 16], strides = [1, 1, 1]} : vector<4x18x18xbf16> to vector<4x16x16xbf16>
    %10 = vector.extract_strided_slice %4 {offsets = [0, 1, 2], sizes = [4, 16, 16], strides = [1, 1, 1]} : vector<4x18x18xbf16> to vector<4x16x16xbf16>
    %11 = vector.extract_strided_slice %4 {offsets = [0, 2, 0], sizes = [4, 16, 16], strides = [1, 1, 1]} : vector<4x18x18xbf16> to vector<4x16x16xbf16>
    %12 = vector.extract_strided_slice %4 {offsets = [0, 2, 1], sizes = [4, 16, 16], strides = [1, 1, 1]} : vector<4x18x18xbf16> to vector<4x16x16xbf16>
    %13 = vector.extract_strided_slice %4 {offsets = [0, 2, 2], sizes = [4, 16, 16], strides = [1, 1, 1]} : vector<4x18x18xbf16> to vector<4x16x16xbf16>
    %14 = tpu.concatenate %5, %6, %7, %8, %9, %10, %11, %12, %13 in 0 : vector<4x16x16xbf16>, vector<4x16x16xbf16>, vector<4x16x16xbf16>, vector<4x16x16xbf16>, vector<4x16x16xbf16>, vector<4x16x16xbf16>, vector<4x16x16xbf16>, vector<4x16x16xbf16>, vector<4x16x16xbf16> -> vector<36x16x16xbf16>
    %15 = vector.shape_cast %14 : vector<36x16x16xbf16> to vector<36x256xbf16>
    %c0_2 = arith.constant 0 : index
    %c0_3 = arith.constant 0 : index
    %16 = vector.load %arg3[%c0_2, %c0_3] : memref<8x36xbf16, #tpu.memory_space<vmem>>, vector<8x36xbf16>
    %cst = arith.constant dense<0.000000e+00> : vector<8x256xf32>
    %17 = tpu.matmul %16, %15, %cst {dimension_numbers = #tpu.dot_dimension_numbers<[1], [0], [0], [1], [0, 0, 1, 1], [], []>} : vector<8x36xbf16>, vector<36x256xbf16>, vector<8x256xf32> -> vector<8x256xf32>
    %18 = arith.truncf %17 : vector<8x256xf32> to vector<8x256xbf16>
    %c0_4 = arith.constant 0 : index
    %c0_5 = arith.constant 0 : index
    %c0_6 = arith.constant 0 : index
    %19 = vector.load %arg4[%c0_4, %c0_5, %c0_6] : memref<1x8x256xbf16, #tpu.memory_space<vmem>>, vector<1x8x256xbf16>
    %20 = vector.shape_cast %19 : vector<1x8x256xbf16> to vector<8x256xbf16>
    %21 = vector.shape_cast %18 : vector<8x256xbf16> to vector<1x8x256xbf16>
    tpu.vector_store %arg4[%c0_4, %c0_5, %c0_6], %21 {strides = array<i32>} : memref<1x8x256xbf16, #tpu.memory_space<vmem>>, vector<1x8x256xbf16>,
    %cst_7 = arith.constant dense<0.000000e+00> : vector<8xf32>
    %22 = vector.multi_reduction <add>, %17, %cst_7 [1] : vector<8x256xf32> to vector<8xf32>
    %23 = vector.shape_cast %22 : vector<8xf32> to vector<8x1xf32>
    %24 = arith.mulf %17, %17 : vector<8x256xf32>
    %cst_8 = arith.constant dense<0.000000e+00> : vector<8xf32>
    %25 = vector.multi_reduction <add>, %24, %cst_8 [1] : vector<8x256xf32> to vector<8xf32>
    %26 = vector.shape_cast %25 : vector<8xf32> to vector<8x1xf32>
    %27 = tpu.concatenate %23, %26 in 1 : vector<8x1xf32>, vector<8x1xf32> -> vector<8x2xf32>
    %c0_9 = arith.constant 0 : index
    %c0_10 = arith.constant 0 : index
    %c0_11 = arith.constant 0 : index
    %c0_12 = arith.constant 0 : index
    %28 = vector.load %arg5[%c0_9, %c0_10, %c0_11, %c0_12] : memref<1x1x8x2xf32, #tpu.memory_space<vmem>>, vector<1x1x8x2xf32>
    %29 = vector.shape_cast %28 : vector<1x1x8x2xf32> to vector<8x2xf32>
    %30 = vector.shape_cast %27 : vector<8x2xf32> to vector<1x1x8x2xf32>
    tpu.vector_store %arg5[%c0_9, %c0_10, %c0_11, %c0_12], %30 {strides = array<i32>} : memref<1x1x8x2xf32, #tpu.memory_space<vmem>>, vector<1x1x8x2xf32>,
    return
  }
  func.func @transform_0(%arg0: i32, %arg1: i32) -> (i32, i32, i32, i32) {
    %c0_i32 = arith.constant 0 : i32
    %c0_i32_0 = arith.constant 0 : i32
    %c0_i32_1 = arith.constant 0 : i32
    %c0_i32_2 = arith.constant 0 : i32
    return %arg0, %c0_i32, %c0_i32_0, %c0_i32_1 : i32, i32, i32, i32
  }
  func.func @transform_1(%arg0: i32, %arg1: i32) -> (i32, i32) {
    %c0_i32 = arith.constant 0 : i32
    %c0_i32_0 = arith.constant 0 : i32
    %c0_i32_1 = arith.constant 0 : i32
    return %c0_i32, %c0_i32_0 : i32, i32
  }
  func.func @transform_2(%arg0: i32, %arg1: i32) -> (i32, i32, i32) {
    %c0_i32 = arith.constant 0 : i32
    %c0_i32_0 = arith.constant 0 : i32
    return %arg0, %c0_i32, %arg1 : i32, i32, i32
  }
  func.func @transform_3(%arg0: i32, %arg1: i32) -> (i32, i32, i32, i32) {
    %c0_i32 = arith.constant 0 : i32
    %c0_i32_0 = arith.constant 0 : i32
    %c0_i32_1 = arith.constant 0 : i32
    return %arg0, %arg1, %c0_i32, %c0_i32_0 : i32, i32, i32, i32
  }
}

module attributes {stable_mosaic.version = 11 : i64} {
  func.func @bn_relu_kernel(%arg0: i32, %arg1: memref<16x256xbf16, #tpu.memory_space<vmem>>, %arg2: memref<16x1xf32, #tpu.memory_space<vmem>>, %arg3: memref<16x1xf32, #tpu.memory_space<vmem>>, %arg4: memref<16x256xf32, #tpu.memory_space<vmem>>) attributes {dimension_semantics = [#tpu.dimension_semantics<parallel>], iteration_bounds = array<i64: 1>, scalar_prefetch = 0 : i64, scratch_operands = 0 : i64, tpu.core_type = #tpu.core_type<tc>, window_params = [{transform_indices = @transform_0, window_bounds = array<i64: 16, 256>}, {pipeline_mode = #tpu.pipeline_mode<synchronous>, transform_indices = @transform_1, window_bounds = array<i64: 16, 1>}, {pipeline_mode = #tpu.pipeline_mode<synchronous>, transform_indices = @transform_2, window_bounds = array<i64: 16, 1>}, {transform_indices = @transform_3, window_bounds = array<i64: 16, 256>}]} {
    %c0 = arith.constant 0 : index
    %c0_0 = arith.constant 0 : index
    %0 = vector.load %arg1[%c0, %c0_0] : memref<16x256xbf16, #tpu.memory_space<vmem>>, vector<16x256xbf16>
    %1 = arith.extf %0 : vector<16x256xbf16> to vector<16x256xf32>
    %c0_1 = arith.constant 0 : index
    %c0_2 = arith.constant 0 : index
    %2 = vector.load %arg2[%c0_1, %c0_2] : memref<16x1xf32, #tpu.memory_space<vmem>>, vector<16x1xf32>
    %3 = vector.broadcast %2 : vector<16x1xf32> to vector<16x256xf32>
    %4 = arith.mulf %1, %3 : vector<16x256xf32>
    %c0_3 = arith.constant 0 : index
    %c0_4 = arith.constant 0 : index
    %5 = vector.load %arg3[%c0_3, %c0_4] : memref<16x1xf32, #tpu.memory_space<vmem>>, vector<16x1xf32>
    %6 = vector.broadcast %5 : vector<16x1xf32> to vector<16x256xf32>
    %7 = arith.addf %4, %6 : vector<16x256xf32>
    %cst = arith.constant 0.000000e+00 : f32
    %8 = vector.broadcast %cst : f32 to vector<16x256xf32>
    %9 = arith.maximumf %7, %8 : vector<16x256xf32>
    %c0_5 = arith.constant 0 : index
    %c0_6 = arith.constant 0 : index
    %10 = vector.load %arg4[%c0_5, %c0_6] : memref<16x256xf32, #tpu.memory_space<vmem>>, vector<16x256xf32>
    tpu.vector_store %arg4[%c0_5, %c0_6], %9 {strides = array<i32>} : memref<16x256xf32, #tpu.memory_space<vmem>>, vector<16x256xf32>,
    return
  }
  func.func @transform_0(%arg0: i32) -> (i32, i32) {
    %c0_i32 = arith.constant 0 : i32
    %c0_i32_0 = arith.constant 0 : i32
    return %c0_i32, %arg0 : i32, i32
  }
  func.func @transform_1(%arg0: i32) -> (i32, i32) {
    %c0_i32 = arith.constant 0 : i32
    %c0_i32_0 = arith.constant 0 : i32
    %c0_i32_1 = arith.constant 0 : i32
    return %c0_i32, %c0_i32_0 : i32, i32
  }
  func.func @transform_2(%arg0: i32) -> (i32, i32) {
    %c0_i32 = arith.constant 0 : i32
    %c0_i32_0 = arith.constant 0 : i32
    %c0_i32_1 = arith.constant 0 : i32
    return %c0_i32, %c0_i32_0 : i32, i32
  }
  func.func @transform_3(%arg0: i32) -> (i32, i32) {
    %c0_i32 = arith.constant 0 : i32
    %c0_i32_0 = arith.constant 0 : i32
    return %c0_i32, %arg0 : i32, i32
  }
}

</mosaic_0001>

<llo_original>
// kernel: conv_block_forward.3
$region0: #{conv_block_forward.3}
  #allocation0 [shape = 'u32[]', space=smem, size = 0x4, offset = 0x4, fixed_abs, tag = 'smem constant byte address 0x4 - core index']
  #allocation1 [shape = 'u32[144,128]{1,0:T(1,128)}', space=vmem, size = 0x12000, scoped, tag = 'internal scratch']
  %s0 = inlined_call_operand.vmem [shape: bf16[16,256], index: 0, kind: input, shape index: {}]
  %s1 = inlined_call_operand.vmem [shape: f32[16,1], index: 1, kind: input, shape index: {}]
  %s2 = inlined_call_operand.vmem [shape: f32[16,1], index: 2, kind: input, shape index: {}]
  %s3 = inlined_call_operand.vmem [shape: f32[16,256], index: 3, kind: output, shape index: {}]
  %s4 = sld [smem:[#allocation0]]
  $region22: #{conv_block_forward.3} parent=0
    _
  %s6 = ssub.s32 1, %s4
  %s7 = scalar_select 0, %s6, %s4
  // Predicated region
  $region2: #{conv_block_forward.3} parent=0 // pred_check
    _
  $region3: #{conv_block_forward.3} parent=0 // pred_check_branch
    %9 = sbr.rel (0) target = $region5
  $region4: #{conv_block_forward.3} parent=0 // pred_region
    _
  $region5: #{conv_block_forward.3} parent=0 // pred_fallthru
    _
  // Predicated region
  $region6: #{conv_block_forward.3} parent=0 // pred_check
    _
  $region7: #{conv_block_forward.3} parent=0 // pred_check_branch
    %11 = sbr.rel (0) target = $region9
  $region8: #{conv_block_forward.3} parent=0 // pred_region
    _
  $region9: #{conv_block_forward.3} parent=0 // pred_fallthru
    _
  // Predicated region
  $region10: #{conv_block_forward.3} parent=0 // pred_check
    _
  $region11: #{conv_block_forward.3} parent=0 // pred_check_branch
    %13 = sbr.rel (0) target = $region13
  $region12: #{conv_block_forward.3} parent=0 // pred_region
    _
  $region13: #{conv_block_forward.3} parent=0 // pred_fallthru
    _
  %v14 = vld [vmem:[%s0] sm:$0xff]
  %v15 = vld [vmem:[%s0 + $0x8] sm:$0xff]
  %v16 = vunpack.c.l.bf16 %v14
  %v17 = vunpack.c.h.bf16 %v14
  %v18 = vunpack.c.l.bf16 %v15
  %v19 = vunpack.c.h.bf16 %v15
  %v20 = vld [vmem:[%s1] sm:$0xff]
  %v21 = vld [vmem:[%s1 + $0x8] sm:$0xff]
  %23 = vset.pattern.permute.xlu0 0
  %24 = vperm.xlu0 %23, %v20
  %v25 = vpop.permute.xlu0 %24
  %28 = vset.pattern.permute.xlu0 0
  %29 = vperm.xlu0 %28, %v21
  %v30 = vpop.permute.xlu0 %29
  %v32 = vmul.f32 %v16, %v25
  %v33 = vmul.f32 %v17, %v25
  %v34 = vmul.f32 %v18, %v30
  %v35 = vmul.f32 %v19, %v30
  %v36 = vld [vmem:[%s2] sm:$0xff]
  %v37 = vld [vmem:[%s2 + $0x8] sm:$0xff]
  %39 = vset.pattern.permute.xlu0 0
  %40 = vperm.xlu0 %39, %v36
  %v41 = vpop.permute.xlu0 %40
  %44 = vset.pattern.permute.xlu0 0
  %45 = vperm.xlu0 %44, %v37
  %v46 = vpop.permute.xlu0 %45
  %v48 = vadd.f32 %v32, %v41
  %v49 = vadd.f32 %v33, %v41
  %v50 = vadd.f32 %v34, %v46
  %v51 = vadd.f32 %v35, %v46
  %v52 = vmax.f32 %v48, 0.0
  %v53 = vmax.f32 %v49, 0.0
  %v54 = vmax.f32 %v50, 0.0
  %v55 = vmax.f32 %v51, 0.0
  %56 = vst [vmem:[%s3] sm:$0xff] %v52
  %57 = vst [vmem:[%s3 + $0x8] sm:$0xff] %v53
  %58 = vst [vmem:[%s3 + $0x10] sm:$0xff] %v54
  %59 = vst [vmem:[%s3 + $0x18] sm:$0xff] %v55
  // Predicated region
  $region14: #{conv_block_forward.3} parent=0 // pred_check
    _
  $region15: #{conv_block_forward.3} parent=0 // pred_check_branch
    %61 = sbr.rel (0) target = $region17
  $region16: #{conv_block_forward.3} parent=0 // pred_region
    _
  $region17: #{conv_block_forward.3} parent=0 // pred_fallthru
    _
  // Predicated region
  $region18: #{conv_block_forward.3} parent=0 // pred_check
    _
  $region19: #{conv_block_forward.3} parent=0 // pred_check_branch
    %63 = sbr.rel (0) target = $region21
  $region20: #{conv_block_forward.3} parent=0 // pred_region
    _
  $region21: #{conv_block_forward.3} parent=0 // pred_fallthru
    _

// kernel: conv_block_forward.2
$region0: #{conv_block_forward.2}
  #allocation0 [shape = 'u32[]', space=smem, size = 0x4, offset = 0x4, fixed_abs, tag = 'smem constant byte address 0x4 - core index']
  #allocation1 [shape = 'u32[144,128]{1,0:T(1,128)}', space=vmem, size = 0x12000, scoped, tag = 'internal scratch']
  %s0 = inlined_call_operand.vmem [shape: bf16[2,4,18,18], index: 0, kind: input, shape index: {}]
  %s1 = inlined_call_operand.vmem [shape: bf16[8,36], index: 1, kind: input, shape index: {}]
  %s2 = inlined_call_operand.vmem [shape: bf16[2,8,256], index: 2, kind: output, shape index: {0}]
  %s3 = inlined_call_operand.vmem [shape: f32[2,1,8,2], index: 3, kind: output, shape index: {1}]
  %4 = xla_tuple %s2, %s3
  %s5 = sld [smem:[#allocation0]]
  $region49: #{conv_block_forward.2} parent=0
    _
  %s7 = ssub.s32 1, %s5
  %s8 = scalar_select 0, %s7, %s5
  loop: start=0, step=1, limit=4
  $region2: #{conv_block_forward.2} parent=0 // loop_pre_header
    _
  $region3: #{conv_block_forward.2} parent=0 // loop_header
    %s10 = sphi 0, %s14
    %p11 = scmp.ge.s32.totalorder %s10, 4
    %s17 = sphi 0, %s29
    %s18 = sphi 0, %s25
    %s19 = sphi 0, %s17
    %s20 = sphi 0, %s18
    %s21 = sphi 0, %s19
    %s22 = sphi 0, %s20
    %s32 = sphi 0, %s34
    %s35 = sphi 0, %s32
    %s36 = sphi 0, %s35
    %s52 = sphi 0, %s36
    %s56 = sphi 0, %s56
    %s58 = sphi 0, %s56
    %s59 = sphi 0, %s58
    %s73 = sphi 0, %s59
    %s81 = sphi 0, %s83
    %s84 = sphi 0, %s81
    %s85 = sphi 0, %s84
    %s101 = sphi 0, %s85
    %s109 = sphi 0, %s111
    %s112 = sphi 0, %s109
    %s113 = sphi 0, %s112
    %s129 = sphi 0, %s113
  $region4: #{conv_block_forward.2} parent=0 // loop_header_branch
    %13 = sbr.rel (%p11) target = $region8
  $region5: #{conv_block_forward.2} parent=0 // loop_body
    %s15 = ssub.s32 %s10, 1
    %s16 = ssub.s32 %s10, 2
    %s23 = sadd.s32 1, %s18
    %p24 = scmp.ge.s32.totalorder %s23, 1
    %s25 = scalar_select %p24, 0, %s23
    %s26 = sadd.s32 1, %s17
    %s27 = scalar_select %p24, %s26, %s17
    %p28 = scmp.ge.s32.totalorder %s27, 2
    %s29 = scalar_select %p28, 0, %s27
    %s30 = ssub.s32 %s17, %s29
    %p31 = scmp.eq.s32.totalorder %s30, 0
    %s33 = sadd.s32 %s32, 1
    %s34 = scalar_select %p31, %s32, %s33
    %p37 = pneg %p31
    %p38 = scmp.eq.s32.totalorder %s10, 1
    %p39 = por %p37, %p38
    %p40 = scmp.ne.s32.totalorder %s32, %s35
    %p41 = scmp.eq.s32.totalorder %s10, 0
    %p42 = por %p40, %p41
    %p43 = scmp.ne.s32.totalorder %s32, %s35
    %p44 = scmp.eq.s32.totalorder %s15, 1
    %p45 = por %p43, %p44
    %p46 = scmp.ne.s32.totalorder %s35, %s36
    %p47 = scmp.eq.s32.totalorder %s15, 0
    %p48 = por %p46, %p47
    %p49 = scmp.ne.s32.totalorder %s35, %s36
    %p50 = scmp.eq.s32.totalorder %s16, 1
    %p51 = por %p49, %p50
    %p53 = scmp.ne.s32.totalorder %s36, %s52
    %p54 = scmp.eq.s32.totalorder %s16, 0
    %p55 = por %p53, %p54
    %s57 = sadd.s32 %s56, 1
    %p60 = scmp.eq.s32.totalorder %s10, 1
    %p61 = scmp.ne.s32.totalorder %s56, %s58
    %p62 = scmp.eq.s32.totalorder %s10, 0
    %p63 = por %p61, %p62
    %p64 = scmp.ne.s32.totalorder %s56, %s58
    %p65 = scmp.eq.s32.totalorder %s15, 1
    %p66 = por %p64, %p65
    %p67 = scmp.ne.s32.totalorder %s58, %s59
    %p68 = scmp.eq.s32.totalorder %s15, 0
    %p69 = por %p67, %p68
    %p70 = scmp.ne.s32.totalorder %s58, %s59
    %p71 = scmp.eq.s32.totalorder %s16, 1
    %p72 = por %p70, %p71
    %p74 = scmp.ne.s32.totalorder %s59, %s73
    %p75 = scmp.eq.s32.totalorder %s16, 0
    %p76 = por %p74, %p75
    %s77 = ssub.s32 %s17, %s29
    %s78 = ssub.s32 %s18, %s25
    %s79 = sor.u32 %s77, %s78
    %p80 = scmp.eq.s32.totalorder %s79, 0
    %s82 = sadd.s32 %s81, 1
    %s83 = scalar_select %p80, %s81, %s82
    %p86 = pneg %p80
    %p87 = scmp.eq.s32.totalorder %s10, 1
    %p88 = por %p86, %p87
    %p89 = scmp.ne.s32.totalorder %s81, %s84
    %p90 = scmp.eq.s32.totalorder %s10, 0
    %p91 = por %p89, %p90
    %p92 = scmp.ne.s32.totalorder %s81, %s84
    %p93 = scmp.eq.s32.totalorder %s15, 1
    %p94 = por %p92, %p93
    %p95 = scmp.ne.s32.totalorder %s84, %s85
    %p96 = scmp.eq.s32.totalorder %s15, 0
    %p97 = por %p95, %p96
    %p98 = scmp.ne.s32.totalorder %s84, %s85
    %p99 = scmp.eq.s32.totalorder %s16, 1
    %p100 = por %p98, %p99
    %p102 = scmp.ne.s32.totalorder %s85, %s101
    %p103 = scmp.eq.s32.totalorder %s16, 0
    %p104 = por %p102, %p103
    %s105 = ssub.s32 %s17, %s29
    %s106 = ssub.s32 %s18, %s25
    %s107 = sor.u32 %s105, %s106
    %p108 = scmp.eq.s32.totalorder %s107, 0
    %s110 = sadd.s32 %s109, 1
    %s111 = scalar_select %p108, %s109, %s110
    %p114 = pneg %p108
    %p115 = scmp.eq.s32.totalorder %s10, 1
    %p116 = por %p114, %p115
    %p117 = scmp.ne.s32.totalorder %s109, %s112
    %p118 = scmp.eq.s32.totalorder %s10, 0
    %p119 = por %p117, %p118
    %p120 = scmp.ne.s32.totalorder %s109, %s112
    %p121 = scmp.eq.s32.totalorder %s15, 1
    %p122 = por %p120, %p121
    %p123 = scmp.ne.s32.totalorder %s112, %s113
    %p124 = scmp.eq.s32.totalorder %s15, 0
    %p125 = por %p123, %p124
    %p126 = scmp.ne.s32.totalorder %s112, %s113
    %p127 = scmp.eq.s32.totalorder %s16, 1
    %p128 = por %p126, %p127
    %p130 = scmp.ne.s32.totalorder %s113, %s129
    %p131 = scmp.eq.s32.totalorder %s16, 0
    %p132 = por %p130, %p131
    %p133 = scmp.le.s32.totalorder 1, %s10
    %p134 = scmp.lt.s32.totalorder %s10, 3
    %p135 = pnand %p133, %p134
    %p136 = pneg %p135
    // Predicated region
    $region9: #{conv_block_forward.2} parent=5 // pred_check
      _
    $region10: #{conv_block_forward.2} parent=5 // pred_check_branch
      %138 = sbr.rel (%p135) target = $region12
    $region11: #{conv_block_forward.2} parent=5 // pred_region
      %s139 = ssub.s32 %s10, 1
      // Predicated region
      $region13: #{conv_block_forward.2} parent=11 // pred_check
        %p140 = pneg %p69
      $region14: #{conv_block_forward.2} parent=11 // pred_check_branch
        %142 = sbr.rel (%p140) target = $region16
      $region15: #{conv_block_forward.2} parent=11 // pred_region
        _
      $region16: #{conv_block_forward.2} parent=11 // pred_fallthru
        _
    $region12: #{conv_block_forward.2} parent=5 // pred_fallthru
      _
    %p143 = scmp.lt.s32.totalorder %s10, 2
    // Predicated region
    $region17: #{conv_block_forward.2} parent=5 // pred_check
      %p144 = pneg %p143
    $region18: #{conv_block_forward.2} parent=5 // pred_check_branch
      %146 = sbr.rel (%p144) target = $region20
    $region19: #{conv_block_forward.2} parent=5 // pred_region
      // Predicated region
      $region21: #{conv_block_forward.2} parent=19 // pred_check
        %p147 = pneg %p42
      $region22: #{conv_block_forward.2} parent=19 // pred_check_branch
        %149 = sbr.rel (%p147) target = $region24
      $region23: #{conv_block_forward.2} parent=19 // pred_region
        %p150 = scmp.lt.s32.totalorder %s17, 1
        %s151 = scalar_select %p150, %s17, 1
        %s152 = smul.addr %s151, 12
        %s153 = smul.addr %s152, 4
        %s154 = scalar_lea.vmem %s0, %s153
      $region24: #{conv_block_forward.2} parent=19 // pred_fallthru
        _
    $region20: #{conv_block_forward.2} parent=5 // pred_fallthru
      _
    %p155 = scmp.le.s32.totalorder 1, %s10
    %p156 = scmp.lt.s32.totalorder %s10, 3
    %p157 = pnand %p155, %p156
    %p158 = pneg %p157
    // Predicated region
    $region25: #{conv_block_forward.2} parent=5 // pred_check
      _
    $region26: #{conv_block_forward.2} parent=5 // pred_check_branch
      %160 = sbr.rel (%p157) target = $region28
    $region27: #{conv_block_forward.2} parent=5 // pred_region
      %s161 = ssub.s32 %s10, 1
      %p162 = scmp.lt.s32.totalorder %s19, 1
      %s163 = scalar_select %p162, %s19, 1
      %s164 = smul.addr %s163, 12
      %s165 = smul.addr %s164, 4
      %s166 = scalar_lea.vmem %s0, %s165
      %p167 = pneg %p48
      %p168 = pneg %p45
      %p169 = pneg %p69
      %p170 = pneg %p66
      %p171 = pneg %p97
      %p172 = pneg %p94
      %s173 = smul.u32 2, %s20
      %p174 = scmp.lt.s32.totalorder %s19, 1
      %s175 = scalar_select %p174, %s19, 1
      %p176 = scmp.lt.s32.totalorder %s173, 1
      %s177 = scalar_select %p176, %s173, 1
      %s178 = smul.addr %s175, 2
      %s179 = sadd.s32 %s177, %s178
      %s180 = smul.addr %s179, 4
      %s181 = scalar_lea.vmem %s2, %s180
      %p182 = pneg %p125
      %p183 = pneg %p122
      %p184 = scmp.lt.s32.totalorder %s19, 1
      %s185 = scalar_select %p184, %s19, 1
      %p186 = scmp.lt.s32.totalorder %s20, 0
      %s187 = scalar_select %p186, %s20, 0
      %s188 = sadd.s32 %s187, %s185
      %s189 = smul.addr %s188, 8
      %s190 = scalar_lea.vmem %s3, %s189
      %p191 = scmp.lt.s32.totalorder %s19, 1
      %s192 = scalar_select %p191, %s19, 1
      %s193 = smul.addr %s192, 12
      %s194 = smul.addr %s193, 4
      %s195 = scalar_lea.vmem %s0, %s194
      %s196 = smul.u32 2, %s20
      %p197 = scmp.lt.s32.totalorder %s19, 1
      %s198 = scalar_select %p197, %s19, 1
      %p199 = scmp.lt.s32.totalorder %s196, 1
      %s200 = scalar_select %p199, %s196, 1
      %s201 = smul.addr %s198, 2
      %s202 = sadd.s32 %s200, %s201
      %s203 = smul.addr %s202, 4
      %s204 = scalar_lea.vmem %s2, %s203
      %s205 = smul.u32 2, %s20
      %p206 = scmp.lt.s32.totalorder %s19, 1
      %s207 = scalar_select %p206, %s19, 1
      %p208 = scmp.lt.s32.totalorder %s20, 0
      %s209 = scalar_select %p208, %s20, 0
      %s210 = sadd.s32 %s209, %s207
      %s211 = smul.addr %s210, 8
      %s212 = scalar_lea.vmem %s3, %s211
      %s214 = smul.u32 %s20, 16
      %s215 = sshra.s32 %s214, 3
      %s216 = sand.u32 %s214, 7
      %s217 = smul.addr %s215, 4
      %s218 = scalar_lea.vmem %s195, %s217
      %v219 = vld [vmem:[%s218] sm:$0xf]
      %v220 = vld [vmem:[%s218 + $0x4] sm:$0xf]
      %v221 = vld [vmem:[%s218 + $0x8] sm:$0x1]
      %v222 = vld [vmem:[%s218 + $0xc] sm:$0xf]
      %v223 = vld [vmem:[%s218 + $0x10] sm:$0xf]
      %v224 = vld [vmem:[%s218 + $0x14] sm:$0x1]
      %v225 = vld [vmem:[%s218 + $0x18] sm:$0xf]
      %v226 = vld [vmem:[%s218 + $0x1c] sm:$0xf]
      %v227 = vld [vmem:[%s218 + $0x20] sm:$0x1]
      %v228 = vld [vmem:[%s218 + $0x24] sm:$0xf]
      %v229 = vld [vmem:[%s218 + $0x28] sm:$0xf]
      %v230 = vld [vmem:[%s218 + $0x2c] sm:$0x1]
      %239 = vrot.lane.b32.xlu0 %v219, 127
      %v240 = vpop.permute.xlu0 %239
      %241 = vrot.lane.b32.xlu0 %v220, 127
      %v242 = vpop.permute.xlu0 %241
      %243 = vrot.lane.b32.xlu0 %v222, 127
      %v244 = vpop.permute.xlu0 %243
      %245 = vrot.lane.b32.xlu0 %v223, 127
      %v246 = vpop.permute.xlu0 %245
      %247 = vrot.lane.b32.xlu0 %v225, 127
      %v248 = vpop.permute.xlu0 %247
      %249 = vrot.lane.b32.xlu0 %v226, 127
      %v250 = vpop.permute.xlu0 %249
      %251 = vrot.lane.b32.xlu0 %v228, 127
      %v252 = vpop.permute.xlu0 %251
      %253 = vrot.lane.b32.xlu0 %v229, 127
      %v254 = vpop.permute.xlu0 %253
      %255 = vrot.lane.b32.xlu0 %v219, 126
      %v256 = vpop.permute.xlu0 %255
      %257 = vrot.lane.b32.xlu0 %v220, 126
      %v258 = vpop.permute.xlu0 %257
      %259 = vrot.lane.b32.xlu0 %v222, 126
      %v260 = vpop.permute.xlu0 %259
      %261 = vrot.lane.b32.xlu0 %v223, 126
      %v262 = vpop.permute.xlu0 %261
      %263 = vrot.lane.b32.xlu0 %v225, 126
      %v264 = vpop.permute.xlu0 %263
      %265 = vrot.lane.b32.xlu0 %v226, 126
      %v266 = vpop.permute.xlu0 %265
      %267 = vrot.lane.b32.xlu0 %v228, 126
      %v268 = vpop.permute.xlu0 %267
      %269 = vrot.lane.b32.xlu0 %v229, 126
      %v270 = vpop.permute.xlu0 %269
      %vm271 = vsmask.f32 3328
      %vm272 = vsmask.f32 7440
      %vm273 = vmor %vm271, %vm272
      %v275 = vshrl.u32 %v219, 16
      %v277 = vrot.slane %v275, 4
      %v278 = vshll.u32 %v219, 16
      %v280 = vrot.slane %v278, 5
      %v281 = vor.u32 %v277, %v280
      %v282 = vrot.slane %v281, 4
      %v284 = vshll.u32 %v220, 16
      %v286 = vrot.slane %v284, 5
      %v287 = vsel %vm273, %v282, %v286
      %v288 = vshrl.u32 %v220, 16
      %v290 = vrot.slane %v288, 4
      %v291 = vor.u32 %v290, %v286
      %v292 = vrot.slane %v291, 4
      %v294 = vshll.u32 %v221, 16
      %v296 = vrot.slane %v294, 5
      %v297 = vsel %vm273, %v292, %v296
      %v299 = vshrl.u32 %v222, 16
      %v301 = vrot.slane %v299, 4
      %v302 = vshll.u32 %v222, 16
      %v304 = vrot.slane %v302, 5
      %v305 = vor.u32 %v301, %v304
      %v306 = vrot.slane %v305, 4
      %v308 = vshll.u32 %v223, 16
      %v310 = vrot.slane %v308, 5
      %v311 = vsel %vm273, %v306, %v310
      %v312 = vshrl.u32 %v223, 16
      %v314 = vrot.slane %v312, 4
      %v315 = vor.u32 %v314, %v310
      %v316 = vrot.slane %v315, 4
      %v318 = vshll.u32 %v224, 16
      %v320 = vrot.slane %v318, 5
      %v321 = vsel %vm273, %v316, %v320
      %v323 = vshrl.u32 %v225, 16
      %v325 = vrot.slane %v323, 4
      %v326 = vshll.u32 %v225, 16
      %v328 = vrot.slane %v326, 5
      %v329 = vor.u32 %v325, %v328
      %v330 = vrot.slane %v329, 4
      %v332 = vshll.u32 %v226, 16
      %v334 = vrot.slane %v332, 5
      %v335 = vsel %vm273, %v330, %v334
      %v336 = vshrl.u32 %v226, 16
      %v338 = vrot.slane %v336, 4
      %v339 = vor.u32 %v338, %v334
      %v340 = vrot.slane %v339, 4
      %v342 = vshll.u32 %v227, 16
      %v344 = vrot.slane %v342, 5
      %v345 = vsel %vm273, %v340, %v344
      %v347 = vshrl.u32 %v228, 16
      %v349 = vrot.slane %v347, 4
      %v350 = vshll.u32 %v228, 16
      %v352 = vrot.slane %v350, 5
      %v353 = vor.u32 %v349, %v352
      %v354 = vrot.slane %v353, 4
      %v356 = vshll.u32 %v229, 16
      %v358 = vrot.slane %v356, 5
      %v359 = vsel %vm273, %v354, %v358
      %v360 = vshrl.u32 %v229, 16
      %v362 = vrot.slane %v360, 4
      %v363 = vor.u32 %v362, %v358
      %v364 = vrot.slane %v363, 4
      %v366 = vshll.u32 %v230, 16
      %v368 = vrot.slane %v366, 5
      %v369 = vsel %vm273, %v364, %v368
      %370 = vrot.lane.b32.xlu0 %v287, 127
      %v371 = vpop.permute.xlu0 %370
      %372 = vrot.lane.b32.xlu0 %v297, 127
      %v373 = vpop.permute.xlu0 %372
      %374 = vrot.lane.b32.xlu0 %v311, 127
      %v375 = vpop.permute.xlu0 %374
      %376 = vrot.lane.b32.xlu0 %v321, 127
      %v377 = vpop.permute.xlu0 %376
      %378 = vrot.lane.b32.xlu0 %v335, 127
      %v379 = vpop.permute.xlu0 %378
      %380 = vrot.lane.b32.xlu0 %v345, 127
      %v381 = vpop.permute.xlu0 %380
      %382 = vrot.lane.b32.xlu0 %v359, 127
      %v383 = vpop.permute.xlu0 %382
      %384 = vrot.lane.b32.xlu0 %v369, 127
      %v385 = vpop.permute.xlu0 %384
      %386 = vrot.lane.b32.xlu0 %v287, 126
      %v387 = vpop.permute.xlu0 %386
      %388 = vrot.lane.b32.xlu0 %v297, 126
      %v389 = vpop.permute.xlu0 %388
      %390 = vrot.lane.b32.xlu0 %v311, 126
      %v391 = vpop.permute.xlu0 %390
      %392 = vrot.lane.b32.xlu0 %v321, 126
      %v393 = vpop.permute.xlu0 %392
      %394 = vrot.lane.b32.xlu0 %v335, 126
      %v395 = vpop.permute.xlu0 %394
      %396 = vrot.lane.b32.xlu0 %v345, 126
      %v397 = vpop.permute.xlu0 %396
      %398 = vrot.lane.b32.xlu0 %v359, 126
      %v399 = vpop.permute.xlu0 %398
      %400 = vrot.lane.b32.xlu0 %v369, 126
      %v401 = vpop.permute.xlu0 %400
      %vm406 = vcmask 1042432
      %vm407 = vcmask 1046532
      %vm408 = vmor %vm406, %vm407
      %v409 = vrot.slane %v219, 5
      %v410 = vrot.slane %v409, 4
      %v411 = vrot.slane %v220, 5
      %v412 = vsel %vm408, %v410, %v411
      %v413 = vrot.slane %v411, 4
      %v414 = vrot.slane %v221, 5
      %v415 = vsel %vm408, %v413, %v414
      %v416 = vrot.slane %v222, 5
      %v417 = vrot.slane %v416, 4
      %v418 = vrot.slane %v223, 5
      %v419 = vsel %vm408, %v417, %v418
      %v420 = vrot.slane %v418, 4
      %v421 = vrot.slane %v224, 5
      %v422 = vsel %vm408, %v420, %v421
      %v423 = vrot.slane %v225, 5
      %v424 = vrot.slane %v423, 4
      %v425 = vrot.slane %v226, 5
      %v426 = vsel %vm408, %v424, %v425
      %v427 = vrot.slane %v425, 4
      %v428 = vrot.slane %v227, 5
      %v429 = vsel %vm408, %v427, %v428
      %v430 = vrot.slane %v228, 5
      %v431 = vrot.slane %v430, 4
      %v432 = vrot.slane %v229, 5
      %v433 = vsel %vm408, %v431, %v432
      %v434 = vrot.slane %v432, 4
      %v435 = vrot.slane %v230, 5
      %v436 = vsel %vm408, %v434, %v435
      %437 = vrot.lane.b32.xlu0 %v412, 127
      %v438 = vpop.permute.xlu0 %437
      %439 = vrot.lane.b32.xlu0 %v415, 127
      %v440 = vpop.permute.xlu0 %439
      %441 = vrot.lane.b32.xlu0 %v419, 127
      %v442 = vpop.permute.xlu0 %441
      %443 = vrot.lane.b32.xlu0 %v422, 127
      %v444 = vpop.permute.xlu0 %443
      %445 = vrot.lane.b32.xlu0 %v426, 127
      %v446 = vpop.permute.xlu0 %445
      %447 = vrot.lane.b32.xlu0 %v429, 127
      %v448 = vpop.permute.xlu0 %447
      %449 = vrot.lane.b32.xlu0 %v433, 127
      %v450 = vpop.permute.xlu0 %449
      %451 = vrot.lane.b32.xlu0 %v436, 127
      %v452 = vpop.permute.xlu0 %451
      %453 = vrot.lane.b32.xlu0 %v412, 126
      %v454 = vpop.permute.xlu0 %453
      %455 = vrot.lane.b32.xlu0 %v415, 126
      %v456 = vpop.permute.xlu0 %455
      %457 = vrot.lane.b32.xlu0 %v419, 126
      %v458 = vpop.permute.xlu0 %457
      %459 = vrot.lane.b32.xlu0 %v422, 126
      %v460 = vpop.permute.xlu0 %459
      %461 = vrot.lane.b32.xlu0 %v426, 126
      %v462 = vpop.permute.xlu0 %461
      %463 = vrot.lane.b32.xlu0 %v429, 126
      %v464 = vpop.permute.xlu0 %463
      %465 = vrot.lane.b32.xlu0 %v433, 126
      %v466 = vpop.permute.xlu0 %465
      %467 = vrot.lane.b32.xlu0 %v436, 126
      %v468 = vpop.permute.xlu0 %467
      %v469 = vpack.i.b16 %v222, %v219
      %v471 = vpack.i.b16 %v299, %v275
      %v473 = vpack.i.b16 %v228, %v225
      %v475 = vpack.i.b16 %v347, %v323
      %v479 = vpack.i.b16 %v244, %v240
      %v481 = vshrl.u32 %v240, 16
      %v482 = vshrl.u32 %v244, 16
      %v483 = vpack.i.b16 %v482, %v481
      %v487 = vpack.i.b16 %v252, %v248
      %v489 = vshrl.u32 %v248, 16
      %v490 = vshrl.u32 %v252, 16
      %v491 = vpack.i.b16 %v490, %v489
      %v495 = vpack.i.b16 %v260, %v256
      %v497 = vshrl.u32 %v256, 16
      %v498 = vshrl.u32 %v260, 16
      %v499 = vpack.i.b16 %v498, %v497
      %v503 = vpack.i.b16 %v268, %v264
      %v505 = vshrl.u32 %v264, 16
      %v506 = vshrl.u32 %v268, 16
      %v507 = vpack.i.b16 %v506, %v505
      %v511 = vpack.i.b16 %v311, %v287
      %v513 = vshrl.u32 %v287, 16
      %v514 = vshrl.u32 %v311, 16
      %v515 = vpack.i.b16 %v514, %v513
      %v519 = vpack.i.b16 %v359, %v335
      %v521 = vshrl.u32 %v335, 16
      %v522 = vshrl.u32 %v359, 16
      %v523 = vpack.i.b16 %v522, %v521
      %v527 = vpack.i.b16 %v375, %v371
      %v529 = vshrl.u32 %v371, 16
      %v530 = vshrl.u32 %v375, 16
      %v531 = vpack.i.b16 %v530, %v529
      %v535 = vpack.i.b16 %v383, %v379
      %v537 = vshrl.u32 %v379, 16
      %v538 = vshrl.u32 %v383, 16
      %v539 = vpack.i.b16 %v538, %v537
      %v543 = vpack.i.b16 %v391, %v387
      %v545 = vshrl.u32 %v387, 16
      %v546 = vshrl.u32 %v391, 16
      %v547 = vpack.i.b16 %v546, %v545
      %v551 = vpack.i.b16 %v399, %v395
      %v553 = vshrl.u32 %v395, 16
      %v554 = vshrl.u32 %v399, 16
      %v555 = vpack.i.b16 %v554, %v553
      %v559 = vpack.i.b16 %v419, %v412
      %v561 = vshrl.u32 %v412, 16
      %v562 = vshrl.u32 %v419, 16
      %v563 = vpack.i.b16 %v562, %v561
      %v567 = vpack.i.b16 %v433, %v426
      %v569 = vshrl.u32 %v426, 16
      %v570 = vshrl.u32 %v433, 16
      %v571 = vpack.i.b16 %v570, %v569
      %v575 = vpack.i.b16 %v442, %v438
      %v577 = vshrl.u32 %v438, 16
      %v578 = vshrl.u32 %v442, 16
      %v579 = vpack.i.b16 %v578, %v577
      %v583 = vpack.i.b16 %v450, %v446
      %v585 = vshrl.u32 %v446, 16
      %v586 = vshrl.u32 %v450, 16
      %v587 = vpack.i.b16 %v586, %v585
      %v591 = vpack.i.b16 %v458, %v454
      %v592 = vshrl.u32 %v454, 16
      %v593 = vshrl.u32 %v458, 16
      %v594 = vpack.i.b16 %v593, %v592
      %v597 = vpack.i.b16 %v466, %v462
      %v598 = vshrl.u32 %v462, 16
      %v599 = vshrl.u32 %v466, 16
      %v600 = vpack.i.b16 %v599, %v598
      %v601 = vpack.i.b16 %v223, %v220
      %v603 = vpack.i.b16 %v312, %v288
      %v605 = vpack.i.b16 %v229, %v226
      %v607 = vpack.i.b16 %v360, %v336
      %v611 = vpack.i.b16 %v246, %v242
      %v613 = vshrl.u32 %v242, 16
      %v614 = vshrl.u32 %v246, 16
      %v615 = vpack.i.b16 %v614, %v613
      %v619 = vpack.i.b16 %v254, %v250
      %v621 = vshrl.u32 %v250, 16
      %v622 = vshrl.u32 %v254, 16
      %v623 = vpack.i.b16 %v622, %v621
      %v627 = vpack.i.b16 %v262, %v258
      %v629 = vshrl.u32 %v258, 16
      %v630 = vshrl.u32 %v262, 16
      %v631 = vpack.i.b16 %v630, %v629
      %v635 = vpack.i.b16 %v270, %v266
      %v637 = vshrl.u32 %v266, 16
      %v638 = vshrl.u32 %v270, 16
      %v639 = vpack.i.b16 %v638, %v637
      %v643 = vpack.i.b16 %v321, %v297
      %v645 = vshrl.u32 %v297, 16
      %v646 = vshrl.u32 %v321, 16
      %v647 = vpack.i.b16 %v646, %v645
      %v651 = vpack.i.b16 %v369, %v345
      %v653 = vshrl.u32 %v345, 16
      %v654 = vshrl.u32 %v369, 16
      %v655 = vpack.i.b16 %v654, %v653
      %v659 = vpack.i.b16 %v377, %v373
      %v661 = vshrl.u32 %v373, 16
      %v662 = vshrl.u32 %v377, 16
      %v663 = vpack.i.b16 %v662, %v661
      %v667 = vpack.i.b16 %v385, %v381
      %v669 = vshrl.u32 %v381, 16
      %v670 = vshrl.u32 %v385, 16
      %v671 = vpack.i.b16 %v670, %v669
      %v675 = vpack.i.b16 %v393, %v389
      %v677 = vshrl.u32 %v389, 16
      %v678 = vshrl.u32 %v393, 16
      %v679 = vpack.i.b16 %v678, %v677
      %v683 = vpack.i.b16 %v401, %v397
      %v685 = vshrl.u32 %v397, 16
      %v686 = vshrl.u32 %v401, 16
      %v687 = vpack.i.b16 %v686, %v685
      %v691 = vpack.i.b16 %v422, %v415
      %v693 = vshrl.u32 %v415, 16
      %v694 = vshrl.u32 %v422, 16
      %v695 = vpack.i.b16 %v694, %v693
      %v699 = vpack.i.b16 %v436, %v429
      %v701 = vshrl.u32 %v429, 16
      %v702 = vshrl.u32 %v436, 16
      %v703 = vpack.i.b16 %v702, %v701
      %v707 = vpack.i.b16 %v444, %v440
      %v709 = vshrl.u32 %v440, 16
      %v710 = vshrl.u32 %v444, 16
      %v711 = vpack.i.b16 %v710, %v709
      %v715 = vpack.i.b16 %v452, %v448
      %v717 = vshrl.u32 %v448, 16
      %v718 = vshrl.u32 %v452, 16
      %v719 = vpack.i.b16 %v718, %v717
      %v723 = vpack.i.b16 %v460, %v456
      %v724 = vshrl.u32 %v456, 16
      %v725 = vshrl.u32 %v460, 16
      %v726 = vpack.i.b16 %v725, %v724
      %v729 = vpack.i.b16 %v468, %v464
      %v730 = vshrl.u32 %v464, 16
      %v731 = vshrl.u32 %v468, 16
      %v732 = vpack.i.b16 %v731, %v730
      %v733 = vcombine.low %v469, %v479
      %v735 = vunpack.c.l.s4 1983009808
      %v736 = vunpack.c.0.s8 %v735
      %v737 = vlaneseq
      %v738 = vshrl.u32 %v737, 7
      %v739 = vsub.s32 %v736, %v738
      %v740 = vrot.slane %v733, %v739
      %v741 = vcombine.low %v473, %v487
      %v743 = vunpack.c.l.s4 1983009808
      %v744 = vunpack.c.0.s8 %v743
      %v745 = vlaneseq
      %v746 = vshrl.u32 %v745, 7
      %v747 = vsub.s32 %v744, %v746
      %v748 = vrot.slane %v741, %v747
      %v749 = vcombine.low %v740, %v748
      %v750 = vcombine.high %v740, %v748
      %v752 = vunpack.c.l.s4 1934713408
      %v753 = vunpack.c.0.s8 %v752
      %v754 = vlaneseq
      %v755 = vshrl.u32 %v754, 7
      %v756 = vsub.s32 %v753, %v755
      %v757 = vrot.slane %v749, %v756
      %v759 = vunpack.c.l.s4 1934713408
      %v760 = vunpack.c.0.s8 %v759
      %v761 = vlaneseq
      %v762 = vshrl.u32 %v761, 7
      %v763 = vsub.s32 %v760, %v762
      %v764 = vrot.slane %v750, %v763
      %v765 = vcombine.high %v757, 0
      %v766 = vcombine.high %v764, 0
      %v767 = vcombine.low %v471, %v483
      %v769 = vunpack.c.l.s4 1983009808
      %v770 = vunpack.c.0.s8 %v769
      %v771 = vlaneseq
      %v772 = vshrl.u32 %v771, 7
      %v773 = vsub.s32 %v770, %v772
      %v774 = vrot.slane %v767, %v773
      %v775 = vcombine.low %v475, %v491
      %v777 = vunpack.c.l.s4 1983009808
      %v778 = vunpack.c.0.s8 %v777
      %v779 = vlaneseq
      %v780 = vshrl.u32 %v779, 7
      %v781 = vsub.s32 %v778, %v780
      %v782 = vrot.slane %v775, %v781
      %v783 = vcombine.low %v774, %v782
      %v784 = vcombine.high %v774, %v782
      %v786 = vunpack.c.l.s4 1934713408
      %v787 = vunpack.c.0.s8 %v786
      %v788 = vlaneseq
      %v789 = vshrl.u32 %v788, 7
      %v790 = vsub.s32 %v787, %v789
      %v791 = vrot.slane %v783, %v790
      %v793 = vunpack.c.l.s4 1934713408
      %v794 = vunpack.c.0.s8 %v793
      %v795 = vlaneseq
      %v796 = vshrl.u32 %v795, 7
      %v797 = vsub.s32 %v794, %v796
      %v798 = vrot.slane %v784, %v797
      %v799 = vcombine.high %v791, 0
      %v800 = vcombine.high %v798, 0
      %v801 = vcombine.low %v495, %v511
      %v803 = vunpack.c.l.s4 1983009808
      %v804 = vunpack.c.0.s8 %v803
      %v805 = vlaneseq
      %v806 = vshrl.u32 %v805, 7
      %v807 = vsub.s32 %v804, %v806
      %v808 = vrot.slane %v801, %v807
      %v809 = vcombine.low %v503, %v519
      %v811 = vunpack.c.l.s4 1983009808
      %v812 = vunpack.c.0.s8 %v811
      %v813 = vlaneseq
      %v814 = vshrl.u32 %v813, 7
      %v815 = vsub.s32 %v812, %v814
      %v816 = vrot.slane %v809, %v815
      %v817 = vcombine.low %v808, %v816
      %v818 = vcombine.high %v808, %v816
      %v820 = vunpack.c.l.s4 1934713408
      %v821 = vunpack.c.0.s8 %v820
      %v822 = vlaneseq
      %v823 = vshrl.u32 %v822, 7
      %v824 = vsub.s32 %v821, %v823
      %v825 = vrot.slane %v817, %v824
      %v827 = vunpack.c.l.s4 1934713408
      %v828 = vunpack.c.0.s8 %v827
      %v829 = vlaneseq
      %v830 = vshrl.u32 %v829, 7
      %v831 = vsub.s32 %v828, %v830
      %v832 = vrot.slane %v818, %v831
      %v833 = vcombine.high %v825, 0
      %v834 = vcombine.high %v832, 0
      %v835 = vcombine.low %v499, %v515
      %v837 = vunpack.c.l.s4 1983009808
      %v838 = vunpack.c.0.s8 %v837
      %v839 = vlaneseq
      %v840 = vshrl.u32 %v839, 7
      %v841 = vsub.s32 %v838, %v840
      %v842 = vrot.slane %v835, %v841
      %v843 = vcombine.low %v507, %v523
      %v845 = vunpack.c.l.s4 1983009808
      %v846 = vunpack.c.0.s8 %v845
      %v847 = vlaneseq
      %v848 = vshrl.u32 %v847, 7
      %v849 = vsub.s32 %v846, %v848
      %v850 = vrot.slane %v843, %v849
      %v851 = vcombine.low %v842, %v850
      %v852 = vcombine.high %v842, %v850
      %v854 = vunpack.c.l.s4 1934713408
      %v855 = vunpack.c.0.s8 %v854
      %v856 = vlaneseq
      %v857 = vshrl.u32 %v856, 7
      %v858 = vsub.s32 %v855, %v857
      %v859 = vrot.slane %v851, %v858
      %v861 = vunpack.c.l.s4 1934713408
      %v862 = vunpack.c.0.s8 %v861
      %v863 = vlaneseq
      %v864 = vshrl.u32 %v863, 7
      %v865 = vsub.s32 %v862, %v864
      %v866 = vrot.slane %v852, %v865
      %v867 = vcombine.high %v859, 0
      %v868 = vcombine.high %v866, 0
      %v869 = vcombine.low %v527, %v543
      %v871 = vunpack.c.l.s4 1983009808
      %v872 = vunpack.c.0.s8 %v871
      %v873 = vlaneseq
      %v874 = vshrl.u32 %v873, 7
      %v875 = vsub.s32 %v872, %v874
      %v876 = vrot.slane %v869, %v875
      %v877 = vcombine.low %v535, %v551
      %v879 = vunpack.c.l.s4 1983009808
      %v880 = vunpack.c.0.s8 %v879
      %v881 = vlaneseq
      %v882 = vshrl.u32 %v881, 7
      %v883 = vsub.s32 %v880, %v882
      %v884 = vrot.slane %v877, %v883
      %v885 = vcombine.low %v876, %v884
      %v886 = vcombine.high %v876, %v884
      %v888 = vunpack.c.l.s4 1934713408
      %v889 = vunpack.c.0.s8 %v888
      %v890 = vlaneseq
      %v891 = vshrl.u32 %v890, 7
      %v892 = vsub.s32 %v889, %v891
      %v893 = vrot.slane %v885, %v892
      %v895 = vunpack.c.l.s4 1934713408
      %v896 = vunpack.c.0.s8 %v895
      %v897 = vlaneseq
      %v898 = vshrl.u32 %v897, 7
      %v899 = vsub.s32 %v896, %v898
      %v900 = vrot.slane %v886, %v899
      %v901 = vcombine.high %v893, 0
      %v902 = vcombine.high %v900, 0
      %v903 = vcombine.low %v531, %v547
      %v905 = vunpack.c.l.s4 1983009808
      %v906 = vunpack.c.0.s8 %v905
      %v907 = vlaneseq
      %v908 = vshrl.u32 %v907, 7
      %v909 = vsub.s32 %v906, %v908
      %v910 = vrot.slane %v903, %v909
      %v911 = vcombine.low %v539, %v555
      %v913 = vunpack.c.l.s4 1983009808
      %v914 = vunpack.c.0.s8 %v913
      %v915 = vlaneseq
      %v916 = vshrl.u32 %v915, 7
      %v917 = vsub.s32 %v914, %v916
      %v918 = vrot.slane %v911, %v917
      %v919 = vcombine.low %v910, %v918
      %v920 = vcombine.high %v910, %v918
      %v922 = vunpack.c.l.s4 1934713408
      %v923 = vunpack.c.0.s8 %v922
      %v924 = vlaneseq
      %v925 = vshrl.u32 %v924, 7
      %v926 = vsub.s32 %v923, %v925
      %v927 = vrot.slane %v919, %v926
      %v929 = vunpack.c.l.s4 1934713408
      %v930 = vunpack.c.0.s8 %v929
      %v931 = vlaneseq
      %v932 = vshrl.u32 %v931, 7
      %v933 = vsub.s32 %v930, %v932
      %v934 = vrot.slane %v920, %v933
      %v935 = vcombine.high %v927, 0
      %v936 = vcombine.high %v934, 0
      %v937 = vcombine.low %v559, %v575
      %v939 = vunpack.c.l.s4 1983009808
      %v940 = vunpack.c.0.s8 %v939
      %v941 = vlaneseq
      %v942 = vshrl.u32 %v941, 7
      %v943 = vsub.s32 %v940, %v942
      %v944 = vrot.slane %v937, %v943
      %v945 = vcombine.low %v567, %v583
      %v947 = vunpack.c.l.s4 1983009808
      %v948 = vunpack.c.0.s8 %v947
      %v949 = vlaneseq
      %v950 = vshrl.u32 %v949, 7
      %v951 = vsub.s32 %v948, %v950
      %v952 = vrot.slane %v945, %v951
      %v953 = vcombine.low %v944, %v952
      %v954 = vcombine.high %v944, %v952
      %v956 = vunpack.c.l.s4 1934713408
      %v957 = vunpack.c.0.s8 %v956
      %v958 = vlaneseq
      %v959 = vshrl.u32 %v958, 7
      %v960 = vsub.s32 %v957, %v959
      %v961 = vrot.slane %v953, %v960
      %v963 = vunpack.c.l.s4 1934713408
      %v964 = vunpack.c.0.s8 %v963
      %v965 = vlaneseq
      %v966 = vshrl.u32 %v965, 7
      %v967 = vsub.s32 %v964, %v966
      %v968 = vrot.slane %v954, %v967
      %v969 = vcombine.high %v961, 0
      %v970 = vcombine.high %v968, 0
      %v971 = vcombine.low %v563, %v579
      %v973 = vunpack.c.l.s4 1983009808
      %v974 = vunpack.c.0.s8 %v973
      %v975 = vlaneseq
      %v976 = vshrl.u32 %v975, 7
      %v977 = vsub.s32 %v974, %v976
      %v978 = vrot.slane %v971, %v977
      %v979 = vcombine.low %v571, %v587
      %v981 = vunpack.c.l.s4 1983009808
      %v982 = vunpack.c.0.s8 %v981
      %v983 = vlaneseq
      %v984 = vshrl.u32 %v983, 7
      %v985 = vsub.s32 %v982, %v984
      %v986 = vrot.slane %v979, %v985
      %v987 = vcombine.low %v978, %v986
      %v988 = vcombine.high %v978, %v986
      %v990 = vunpack.c.l.s4 1934713408
      %v991 = vunpack.c.0.s8 %v990
      %v992 = vlaneseq
      %v993 = vshrl.u32 %v992, 7
      %v994 = vsub.s32 %v991, %v993
      %v995 = vrot.slane %v987, %v994
      %v997 = vunpack.c.l.s4 1934713408
      %v998 = vunpack.c.0.s8 %v997
      %v999 = vlaneseq
      %v1000 = vshrl.u32 %v999, 7
      %v1001 = vsub.s32 %v998, %v1000
      %v1002 = vrot.slane %v988, %v1001
      %v1003 = vcombine.high %v995, 0
      %v1004 = vcombine.high %v1002, 0
      %v1007 = vunpack.c.l.s4 1983009808
      %v1008 = vunpack.c.0.s8 %v1007
      %v1009 = vlaneseq
      %v1010 = vshrl.u32 %v1009, 7
      %v1011 = vsub.s32 %v1008, %v1010
      %v1012 = vrot.slane %v591, %v1011
      %v1015 = vunpack.c.l.s4 1983009808
      %v1016 = vunpack.c.0.s8 %v1015
      %v1017 = vlaneseq
      %v1018 = vshrl.u32 %v1017, 7
      %v1019 = vsub.s32 %v1016, %v1018
      %v1020 = vrot.slane %v597, %v1019
      %v1021 = vcombine.low %v1012, %v1020
      %v1022 = vcombine.high %v1012, %v1020
      %v1024 = vunpack.c.l.s4 1934713408
      %v1025 = vunpack.c.0.s8 %v1024
      %v1026 = vlaneseq
      %v1027 = vshrl.u32 %v1026, 7
      %v1028 = vsub.s32 %v1025, %v1027
      %v1029 = vrot.slane %v1021, %v1028
      %v1031 = vunpack.c.l.s4 1934713408
      %v1032 = vunpack.c.0.s8 %v1031
      %v1033 = vlaneseq
      %v1034 = vshrl.u32 %v1033, 7
      %v1035 = vsub.s32 %v1032, %v1034
      %v1036 = vrot.slane %v1022, %v1035
      %v1037 = vcombine.high %v1029, 0
      %v1038 = vcombine.high %v1036, 0
      %v1041 = vunpack.c.l.s4 1983009808
      %v1042 = vunpack.c.0.s8 %v1041
      %v1043 = vlaneseq
      %v1044 = vshrl.u32 %v1043, 7
      %v1045 = vsub.s32 %v1042, %v1044
      %v1046 = vrot.slane %v594, %v1045
      %v1049 = vunpack.c.l.s4 1983009808
      %v1050 = vunpack.c.0.s8 %v1049
      %v1051 = vlaneseq
      %v1052 = vshrl.u32 %v1051, 7
      %v1053 = vsub.s32 %v1050, %v1052
      %v1054 = vrot.slane %v600, %v1053
      %v1055 = vcombine.low %v1046, %v1054
      %v1056 = vcombine.high %v1046, %v1054
      %v1058 = vunpack.c.l.s4 1934713408
      %v1059 = vunpack.c.0.s8 %v1058
      %v1060 = vlaneseq
      %v1061 = vshrl.u32 %v1060, 7
      %v1062 = vsub.s32 %v1059, %v1061
      %v1063 = vrot.slane %v1055, %v1062
      %v1065 = vunpack.c.l.s4 1934713408
      %v1066 = vunpack.c.0.s8 %v1065
      %v1067 = vlaneseq
      %v1068 = vshrl.u32 %v1067, 7
      %v1069 = vsub.s32 %v1066, %v1068
      %v1070 = vrot.slane %v1056, %v1069
      %v1071 = vcombine.high %v1063, 0
      %v1072 = vcombine.high %v1070, 0
      %v1073 = vcombine.low %v601, %v611
      %v1075 = vunpack.c.l.s4 1983009808
      %v1076 = vunpack.c.0.s8 %v1075
      %v1077 = vlaneseq
      %v1078 = vshrl.u32 %v1077, 7
      %v1079 = vsub.s32 %v1076, %v1078
      %v1080 = vrot.slane %v1073, %v1079
      %v1081 = vcombine.low %v605, %v619
      %v1083 = vunpack.c.l.s4 1983009808
      %v1084 = vunpack.c.0.s8 %v1083
      %v1085 = vlaneseq
      %v1086 = vshrl.u32 %v1085, 7
      %v1087 = vsub.s32 %v1084, %v1086
      %v1088 = vrot.slane %v1081, %v1087
      %v1089 = vcombine.low %v1080, %v1088
      %v1090 = vcombine.high %v1080, %v1088
      %v1092 = vunpack.c.l.s4 1934713408
      %v1093 = vunpack.c.0.s8 %v1092
      %v1094 = vlaneseq
      %v1095 = vshrl.u32 %v1094, 7
      %v1096 = vsub.s32 %v1093, %v1095
      %v1097 = vrot.slane %v1089, %v1096
      %v1099 = vunpack.c.l.s4 1934713408
      %v1100 = vunpack.c.0.s8 %v1099
      %v1101 = vlaneseq
      %v1102 = vshrl.u32 %v1101, 7
      %v1103 = vsub.s32 %v1100, %v1102
      %v1104 = vrot.slane %v1090, %v1103
      %v1105 = vcombine.high %v1097, 0
      %v1106 = vcombine.high %v1104, 0
      %v1107 = vcombine.low %v603, %v615
      %v1109 = vunpack.c.l.s4 1983009808
      %v1110 = vunpack.c.0.s8 %v1109
      %v1111 = vlaneseq
      %v1112 = vshrl.u32 %v1111, 7
      %v1113 = vsub.s32 %v1110, %v1112
      %v1114 = vrot.slane %v1107, %v1113
      %v1115 = vcombine.low %v607, %v623
      %v1117 = vunpack.c.l.s4 1983009808
      %v1118 = vunpack.c.0.s8 %v1117
      %v1119 = vlaneseq
      %v1120 = vshrl.u32 %v1119, 7
      %v1121 = vsub.s32 %v1118, %v1120
      %v1122 = vrot.slane %v1115, %v1121
      %v1123 = vcombine.low %v1114, %v1122
      %v1124 = vcombine.high %v1114, %v1122
      %v1126 = vunpack.c.l.s4 1934713408
      %v1127 = vunpack.c.0.s8 %v1126
      %v1128 = vlaneseq
      %v1129 = vshrl.u32 %v1128, 7
      %v1130 = vsub.s32 %v1127, %v1129
      %v1131 = vrot.slane %v1123, %v1130
      %v1133 = vunpack.c.l.s4 1934713408
      %v1134 = vunpack.c.0.s8 %v1133
      %v1135 = vlaneseq
      %v1136 = vshrl.u32 %v1135, 7
      %v1137 = vsub.s32 %v1134, %v1136
      %v1138 = vrot.slane %v1124, %v1137
      %v1139 = vcombine.high %v1131, 0
      %v1140 = vcombine.high %v1138, 0
      %v1141 = vcombine.low %v627, %v643
      %v1143 = vunpack.c.l.s4 1983009808
      %v1144 = vunpack.c.0.s8 %v1143
      %v1145 = vlaneseq
      %v1146 = vshrl.u32 %v1145, 7
      %v1147 = vsub.s32 %v1144, %v1146
      %v1148 = vrot.slane %v1141, %v1147
      %v1149 = vcombine.low %v635, %v651
      %v1151 = vunpack.c.l.s4 1983009808
      %v1152 = vunpack.c.0.s8 %v1151
      %v1153 = vlaneseq
      %v1154 = vshrl.u32 %v1153, 7
      %v1155 = vsub.s32 %v1152, %v1154
      %v1156 = vrot.slane %v1149, %v1155
      %v1157 = vcombine.low %v1148, %v1156
      %v1158 = vcombine.high %v1148, %v1156
      %v1160 = vunpack.c.l.s4 1934713408
      %v1161 = vunpack.c.0.s8 %v1160
      %v1162 = vlaneseq
      %v1163 = vshrl.u32 %v1162, 7
      %v1164 = vsub.s32 %v1161, %v1163
      %v1165 = vrot.slane %v1157, %v1164
      %v1167 = vunpack.c.l.s4 1934713408
      %v1168 = vunpack.c.0.s8 %v1167
      %v1169 = vlaneseq
      %v1170 = vshrl.u32 %v1169, 7
      %v1171 = vsub.s32 %v1168, %v1170
      %v1172 = vrot.slane %v1158, %v1171
      %v1173 = vcombine.high %v1165, 0
      %v1174 = vcombine.high %v1172, 0
      %v1175 = vcombine.low %v631, %v647
      %v1177 = vunpack.c.l.s4 1983009808
      %v1178 = vunpack.c.0.s8 %v1177
      %v1179 = vlaneseq
      %v1180 = vshrl.u32 %v1179, 7
      %v1181 = vsub.s32 %v1178, %v1180
      %v1182 = vrot.slane %v1175, %v1181
      %v1183 = vcombine.low %v639, %v655
      %v1185 = vunpack.c.l.s4 1983009808
      %v1186 = vunpack.c.0.s8 %v1185
      %v1187 = vlaneseq
      %v1188 = vshrl.u32 %v1187, 7
      %v1189 = vsub.s32 %v1186, %v1188
      %v1190 = vrot.slane %v1183, %v1189
      %v1191 = vcombine.low %v1182, %v1190
      %v1192 = vcombine.high %v1182, %v1190
      %v1194 = vunpack.c.l.s4 1934713408
      %v1195 = vunpack.c.0.s8 %v1194
      %v1196 = vlaneseq
      %v1197 = vshrl.u32 %v1196, 7
      %v1198 = vsub.s32 %v1195, %v1197
      %v1199 = vrot.slane %v1191, %v1198
      %v1201 = vunpack.c.l.s4 1934713408
      %v1202 = vunpack.c.0.s8 %v1201
      %v1203 = vlaneseq
      %v1204 = vshrl.u32 %v1203, 7
      %v1205 = vsub.s32 %v1202, %v1204
      %v1206 = vrot.slane %v1192, %v1205
      %v1207 = vcombine.high %v1199, 0
      %v1208 = vcombine.high %v1206, 0
      %v1209 = vcombine.low %v659, %v675
      %v1211 = vunpack.c.l.s4 1983009808
      %v1212 = vunpack.c.0.s8 %v1211
      %v1213 = vlaneseq
      %v1214 = vshrl.u32 %v1213, 7
      %v1215 = vsub.s32 %v1212, %v1214
      %v1216 = vrot.slane %v1209, %v1215
      %v1217 = vcombine.low %v667, %v683
      %v1219 = vunpack.c.l.s4 1983009808
      %v1220 = vunpack.c.0.s8 %v1219
      %v1221 = vlaneseq
      %v1222 = vshrl.u32 %v1221, 7
      %v1223 = vsub.s32 %v1220, %v1222
      %v1224 = vrot.slane %v1217, %v1223
      %v1225 = vcombine.low %v1216, %v1224
      %v1226 = vcombine.high %v1216, %v1224
      %v1228 = vunpack.c.l.s4 1934713408
      %v1229 = vunpack.c.0.s8 %v1228
      %v1230 = vlaneseq
      %v1231 = vshrl.u32 %v1230, 7
      %v1232 = vsub.s32 %v1229, %v1231
      %v1233 = vrot.slane %v1225, %v1232
      %v1235 = vunpack.c.l.s4 1934713408
      %v1236 = vunpack.c.0.s8 %v1235
      %v1237 = vlaneseq
      %v1238 = vshrl.u32 %v1237, 7
      %v1239 = vsub.s32 %v1236, %v1238
      %v1240 = vrot.slane %v1226, %v1239
      %v1241 = vcombine.high %v1233, 0
      %v1242 = vcombine.high %v1240, 0
      %v1243 = vcombine.low %v663, %v679
      %v1245 = vunpack.c.l.s4 1983009808
      %v1246 = vunpack.c.0.s8 %v1245
      %v1247 = vlaneseq
      %v1248 = vshrl.u32 %v1247, 7
      %v1249 = vsub.s32 %v1246, %v1248
      %v1250 = vrot.slane %v1243, %v1249
      %v1251 = vcombine.low %v671, %v687
      %v1253 = vunpack.c.l.s4 1983009808
      %v1254 = vunpack.c.0.s8 %v1253
      %v1255 = vlaneseq
      %v1256 = vshrl.u32 %v1255, 7
      %v1257 = vsub.s32 %v1254, %v1256
      %v1258 = vrot.slane %v1251, %v1257
      %v1259 = vcombine.low %v1250, %v1258
      %v1260 = vcombine.high %v1250, %v1258
      %v1262 = vunpack.c.l.s4 1934713408
      %v1263 = vunpack.c.0.s8 %v1262
      %v1264 = vlaneseq
      %v1265 = vshrl.u32 %v1264, 7
      %v1266 = vsub.s32 %v1263, %v1265
      %v1267 = vrot.slane %v1259, %v1266
      %v1269 = vunpack.c.l.s4 1934713408
      %v1270 = vunpack.c.0.s8 %v1269
      %v1271 = vlaneseq
      %v1272 = vshrl.u32 %v1271, 7
      %v1273 = vsub.s32 %v1270, %v1272
      %v1274 = vrot.slane %v1260, %v1273
      %v1275 = vcombine.high %v1267, 0
      %v1276 = vcombine.high %v1274, 0
      %v1277 = vcombine.low %v691, %v707
      %v1279 = vunpack.c.l.s4 1983009808
      %v1280 = vunpack.c.0.s8 %v1279
      %v1281 = vlaneseq
      %v1282 = vshrl.u32 %v1281, 7
      %v1283 = vsub.s32 %v1280, %v1282
      %v1284 = vrot.slane %v1277, %v1283
      %v1285 = vcombine.low %v699, %v715
      %v1287 = vunpack.c.l.s4 1983009808
      %v1288 = vunpack.c.0.s8 %v1287
      %v1289 = vlaneseq
      %v1290 = vshrl.u32 %v1289, 7
      %v1291 = vsub.s32 %v1288, %v1290
      %v1292 = vrot.slane %v1285, %v1291
      %v1293 = vcombine.low %v1284, %v1292
      %v1294 = vcombine.high %v1284, %v1292
      %v1296 = vunpack.c.l.s4 1934713408
      %v1297 = vunpack.c.0.s8 %v1296
      %v1298 = vlaneseq
      %v1299 = vshrl.u32 %v1298, 7
      %v1300 = vsub.s32 %v1297, %v1299
      %v1301 = vrot.slane %v1293, %v1300
      %v1303 = vunpack.c.l.s4 1934713408
      %v1304 = vunpack.c.0.s8 %v1303
      %v1305 = vlaneseq
      %v1306 = vshrl.u32 %v1305, 7
      %v1307 = vsub.s32 %v1304, %v1306
      %v1308 = vrot.slane %v1294, %v1307
      %v1309 = vcombine.high %v1301, 0
      %v1310 = vcombine.high %v1308, 0
      %v1311 = vcombine.low %v695, %v711
      %v1313 = vunpack.c.l.s4 1983009808
      %v1314 = vunpack.c.0.s8 %v1313
      %v1315 = vlaneseq
      %v1316 = vshrl.u32 %v1315, 7
      %v1317 = vsub.s32 %v1314, %v1316
      %v1318 = vrot.slane %v1311, %v1317
      %v1319 = vcombine.low %v703, %v719
      %v1321 = vunpack.c.l.s4 1983009808
      %v1322 = vunpack.c.0.s8 %v1321
      %v1323 = vlaneseq
      %v1324 = vshrl.u32 %v1323, 7
      %v1325 = vsub.s32 %v1322, %v1324
      %v1326 = vrot.slane %v1319, %v1325
      %v1327 = vcombine.low %v1318, %v1326
      %v1328 = vcombine.high %v1318, %v1326
      %v1330 = vunpack.c.l.s4 1934713408
      %v1331 = vunpack.c.0.s8 %v1330
      %v1332 = vlaneseq
      %v1333 = vshrl.u32 %v1332, 7
      %v1334 = vsub.s32 %v1331, %v1333
      %v1335 = vrot.slane %v1327, %v1334
      %v1337 = vunpack.c.l.s4 1934713408
      %v1338 = vunpack.c.0.s8 %v1337
      %v1339 = vlaneseq
      %v1340 = vshrl.u32 %v1339, 7
      %v1341 = vsub.s32 %v1338, %v1340
      %v1342 = vrot.slane %v1328, %v1341
      %v1343 = vcombine.high %v1335, 0
      %v1344 = vcombine.high %v1342, 0
      %v1347 = vunpack.c.l.s4 1983009808
      %v1348 = vunpack.c.0.s8 %v1347
      %v1349 = vlaneseq
      %v1350 = vshrl.u32 %v1349, 7
      %v1351 = vsub.s32 %v1348, %v1350
      %v1352 = vrot.slane %v723, %v1351
      %v1355 = vunpack.c.l.s4 1983009808
      %v1356 = vunpack.c.0.s8 %v1355
      %v1357 = vlaneseq
      %v1358 = vshrl.u32 %v1357, 7
      %v1359 = vsub.s32 %v1356, %v1358
      %v1360 = vrot.slane %v729, %v1359
      %v1361 = vcombine.low %v1352, %v1360
      %v1362 = vcombine.high %v1352, %v1360
      %v1364 = vunpack.c.l.s4 1934713408
      %v1365 = vunpack.c.0.s8 %v1364
      %v1366 = vlaneseq
      %v1367 = vshrl.u32 %v1366, 7
      %v1368 = vsub.s32 %v1365, %v1367
      %v1369 = vrot.slane %v1361, %v1368
      %v1371 = vunpack.c.l.s4 1934713408
      %v1372 = vunpack.c.0.s8 %v1371
      %v1373 = vlaneseq
      %v1374 = vshrl.u32 %v1373, 7
      %v1375 = vsub.s32 %v1372, %v1374
      %v1376 = vrot.slane %v1362, %v1375
      %v1377 = vcombine.high %v1369, 0
      %v1378 = vcombine.high %v1376, 0
      %v1381 = vunpack.c.l.s4 1983009808
      %v1382 = vunpack.c.0.s8 %v1381
      %v1383 = vlaneseq
      %v1384 = vshrl.u32 %v1383, 7
      %v1385 = vsub.s32 %v1382, %v1384
      %v1386 = vrot.slane %v726, %v1385
      %v1389 = vunpack.c.l.s4 1983009808
      %v1390 = vunpack.c.0.s8 %v1389
      %v1391 = vlaneseq
      %v1392 = vshrl.u32 %v1391, 7
      %v1393 = vsub.s32 %v1390, %v1392
      %v1394 = vrot.slane %v732, %v1393
      %v1395 = vcombine.low %v1386, %v1394
      %v1396 = vcombine.high %v1386, %v1394
      %v1398 = vunpack.c.l.s4 1934713408
      %v1399 = vunpack.c.0.s8 %v1398
      %v1400 = vlaneseq
      %v1401 = vshrl.u32 %v1400, 7
      %v1402 = vsub.s32 %v1399, %v1401
      %v1403 = vrot.slane %v1395, %v1402
      %v1405 = vunpack.c.l.s4 1934713408
      %v1406 = vunpack.c.0.s8 %v1405
      %v1407 = vlaneseq
      %v1408 = vshrl.u32 %v1407, 7
      %v1409 = vsub.s32 %v1406, %v1408
      %v1410 = vrot.slane %v1396, %v1409
      %v1411 = vcombine.high %v1403, 0
      %v1412 = vcombine.high %v1410, 0
      %v1418 = vunpack.c.l.b16 %v757
      %v1419 = vunpack.c.l.b16 %v825
      %v1420 = vunpack.c.l.b16 %v893
      %v1421 = vunpack.c.l.b16 %v961
      %v1422 = vunpack.c.l.b16 %v1029
      %v1423 = vpack.c.b16 %v1419, %v1418
      %v1424 = vpack.c.b16 %v1421, %v1420
      %v1425 = vpack.c.b16 %v1422, %v1422
      %v1431 = vunpack.c.l.b16 %v791
      %v1432 = vunpack.c.l.b16 %v859
      %v1433 = vunpack.c.l.b16 %v927
      %v1434 = vunpack.c.l.b16 %v995
      %v1435 = vunpack.c.l.b16 %v1063
      %v1436 = vpack.c.b16 %v1432, %v1431
      %v1437 = vpack.c.b16 %v1434, %v1433
      %v1438 = vpack.c.b16 %v1435, %v1435
      %1439 = vrot.lane.b32.xlu0 %v1436, 16
      %v1440 = vpop.permute.xlu0 %1439
      %1441 = vrot.lane.b32.xlu0 %v1437, 16
      %v1442 = vpop.permute.xlu0 %1441
      %1443 = vrot.lane.b32.xlu0 %v1438, 16
      %v1444 = vpop.permute.xlu0 %1443
      %v1450 = vunpack.c.l.b16 %v765
      %v1451 = vunpack.c.l.b16 %v833
      %v1452 = vunpack.c.l.b16 %v901
      %v1453 = vunpack.c.l.b16 %v969
      %v1454 = vunpack.c.l.b16 %v1037
      %v1455 = vpack.c.b16 %v1451, %v1450
      %v1456 = vpack.c.b16 %v1453, %v1452
      %v1457 = vpack.c.b16 %v1454, %v1454
      %1458 = vrot.lane.b32.xlu0 %v1455, 32
      %v1459 = vpop.permute.xlu0 %1458
      %1460 = vrot.lane.b32.xlu0 %v1456, 32
      %v1461 = vpop.permute.xlu0 %1460
      %1462 = vrot.lane.b32.xlu0 %v1457, 32
      %v1463 = vpop.permute.xlu0 %1462
      %v1469 = vunpack.c.l.b16 %v799
      %v1470 = vunpack.c.l.b16 %v867
      %v1471 = vunpack.c.l.b16 %v935
      %v1472 = vunpack.c.l.b16 %v1003
      %v1473 = vunpack.c.l.b16 %v1071
      %v1474 = vpack.c.b16 %v1470, %v1469
      %v1475 = vpack.c.b16 %v1472, %v1471
      %v1476 = vpack.c.b16 %v1473, %v1473
      %1477 = vrot.lane.b32.xlu0 %v1474, 48
      %v1478 = vpop.permute.xlu0 %1477
      %1479 = vrot.lane.b32.xlu0 %v1475, 48
      %v1480 = vpop.permute.xlu0 %1479
      %1481 = vrot.lane.b32.xlu0 %v1476, 48
      %v1482 = vpop.permute.xlu0 %1481
      %v1488 = vunpack.c.l.b16 %v764
      %v1489 = vunpack.c.l.b16 %v832
      %v1490 = vunpack.c.l.b16 %v900
      %v1491 = vunpack.c.l.b16 %v968
      %v1492 = vunpack.c.l.b16 %v1036
      %v1493 = vpack.c.b16 %v1489, %v1488
      %v1494 = vpack.c.b16 %v1491, %v1490
      %v1495 = vpack.c.b16 %v1492, %v1492
      %1496 = vrot.lane.b32.xlu0 %v1493, 64
      %v1497 = vpop.permute.xlu0 %1496
      %1498 = vrot.lane.b32.xlu0 %v1494, 64
      %v1499 = vpop.permute.xlu0 %1498
      %1500 = vrot.lane.b32.xlu0 %v1495, 64
      %v1501 = vpop.permute.xlu0 %1500
      %v1507 = vunpack.c.l.b16 %v798
      %v1508 = vunpack.c.l.b16 %v866
      %v1509 = vunpack.c.l.b16 %v934
      %v1510 = vunpack.c.l.b16 %v1002
      %v1511 = vunpack.c.l.b16 %v1070
      %v1512 = vpack.c.b16 %v1508, %v1507
      %v1513 = vpack.c.b16 %v1510, %v1509
      %v1514 = vpack.c.b16 %v1511, %v1511
      %1515 = vrot.lane.b32.xlu0 %v1512, 80
      %v1516 = vpop.permute.xlu0 %1515
      %1517 = vrot.lane.b32.xlu0 %v1513, 80
      %v1518 = vpop.permute.xlu0 %1517
      %1519 = vrot.lane.b32.xlu0 %v1514, 80
      %v1520 = vpop.permute.xlu0 %1519
      %v1526 = vunpack.c.l.b16 %v766
      %v1527 = vunpack.c.l.b16 %v834
      %v1528 = vunpack.c.l.b16 %v902
      %v1529 = vunpack.c.l.b16 %v970
      %v1530 = vunpack.c.l.b16 %v1038
      %v1531 = vpack.c.b16 %v1527, %v1526
      %v1532 = vpack.c.b16 %v1529, %v1528
      %v1533 = vpack.c.b16 %v1530, %v1530
      %1534 = vrot.lane.b32.xlu0 %v1531, 96
      %v1535 = vpop.permute.xlu0 %1534
      %1536 = vrot.lane.b32.xlu0 %v1532, 96
      %v1537 = vpop.permute.xlu0 %1536
      %1538 = vrot.lane.b32.xlu0 %v1533, 96
      %v1539 = vpop.permute.xlu0 %1538
      %v1545 = vunpack.c.l.b16 %v800
      %v1546 = vunpack.c.l.b16 %v868
      %v1547 = vunpack.c.l.b16 %v936
      %v1548 = vunpack.c.l.b16 %v1004
      %v1549 = vunpack.c.l.b16 %v1072
      %v1550 = vpack.c.b16 %v1546, %v1545
      %v1551 = vpack.c.b16 %v1548, %v1547
      %v1552 = vpack.c.b16 %v1549, %v1549
      %1553 = vrot.lane.b32.xlu0 %v1550, 112
      %v1554 = vpop.permute.xlu0 %1553
      %1555 = vrot.lane.b32.xlu0 %v1551, 112
      %v1556 = vpop.permute.xlu0 %1555
      %1557 = vrot.lane.b32.xlu0 %v1552, 112
      %v1558 = vpop.permute.xlu0 %1557
      %v1564 = vunpack.c.l.b16 %v1097
      %v1565 = vunpack.c.l.b16 %v1165
      %v1566 = vunpack.c.l.b16 %v1233
      %v1567 = vunpack.c.l.b16 %v1301
      %v1568 = vunpack.c.l.b16 %v1369
      %v1569 = vpack.c.b16 %v1565, %v1564
      %v1570 = vpack.c.b16 %v1567, %v1566
      %v1571 = vpack.c.b16 %v1568, %v1568
      %v1577 = vunpack.c.l.b16 %v1131
      %v1578 = vunpack.c.l.b16 %v1199
      %v1579 = vunpack.c.l.b16 %v1267
      %v1580 = vunpack.c.l.b16 %v1335
      %v1581 = vunpack.c.l.b16 %v1403
      %v1582 = vpack.c.b16 %v1578, %v1577
      %v1583 = vpack.c.b16 %v1580, %v1579
      %v1584 = vpack.c.b16 %v1581, %v1581
      %1585 = vrot.lane.b32.xlu0 %v1582, 16
      %v1586 = vpop.permute.xlu0 %1585
      %1587 = vrot.lane.b32.xlu0 %v1583, 16
      %v1588 = vpop.permute.xlu0 %1587
      %1589 = vrot.lane.b32.xlu0 %v1584, 16
      %v1590 = vpop.permute.xlu0 %1589
      %v1596 = vunpack.c.l.b16 %v1105
      %v1597 = vunpack.c.l.b16 %v1173
      %v1598 = vunpack.c.l.b16 %v1241
      %v1599 = vunpack.c.l.b16 %v1309
      %v1600 = vunpack.c.l.b16 %v1377
      %v1601 = vpack.c.b16 %v1597, %v1596
      %v1602 = vpack.c.b16 %v1599, %v1598
      %v1603 = vpack.c.b16 %v1600, %v1600
      %1604 = vrot.lane.b32.xlu0 %v1601, 32
      %v1605 = vpop.permute.xlu0 %1604
      %1606 = vrot.lane.b32.xlu0 %v1602, 32
      %v1607 = vpop.permute.xlu0 %1606
      %1608 = vrot.lane.b32.xlu0 %v1603, 32
      %v1609 = vpop.permute.xlu0 %1608
      %v1615 = vunpack.c.l.b16 %v1139
      %v1616 = vunpack.c.l.b16 %v1207
      %v1617 = vunpack.c.l.b16 %v1275
      %v1618 = vunpack.c.l.b16 %v1343
      %v1619 = vunpack.c.l.b16 %v1411
      %v1620 = vpack.c.b16 %v1616, %v1615
      %v1621 = vpack.c.b16 %v1618, %v1617
      %v1622 = vpack.c.b16 %v1619, %v1619
      %1623 = vrot.lane.b32.xlu0 %v1620, 48
      %v1624 = vpop.permute.xlu0 %1623
      %1625 = vrot.lane.b32.xlu0 %v1621, 48
      %v1626 = vpop.permute.xlu0 %1625
      %1627 = vrot.lane.b32.xlu0 %v1622, 48
      %v1628 = vpop.permute.xlu0 %1627
      %v1634 = vunpack.c.l.b16 %v1104
      %v1635 = vunpack.c.l.b16 %v1172
      %v1636 = vunpack.c.l.b16 %v1240
      %v1637 = vunpack.c.l.b16 %v1308
      %v1638 = vunpack.c.l.b16 %v1376
      %v1639 = vpack.c.b16 %v1635, %v1634
      %v1640 = vpack.c.b16 %v1637, %v1636
      %v1641 = vpack.c.b16 %v1638, %v1638
      %1642 = vrot.lane.b32.xlu0 %v1639, 64
      %v1643 = vpop.permute.xlu0 %1642
      %1644 = vrot.lane.b32.xlu0 %v1640, 64
      %v1645 = vpop.permute.xlu0 %1644
      %1646 = vrot.lane.b32.xlu0 %v1641, 64
      %v1647 = vpop.permute.xlu0 %1646
      %v1653 = vunpack.c.l.b16 %v1138
      %v1654 = vunpack.c.l.b16 %v1206
      %v1655 = vunpack.c.l.b16 %v1274
      %v1656 = vunpack.c.l.b16 %v1342
      %v1657 = vunpack.c.l.b16 %v1410
      %v1658 = vpack.c.b16 %v1654, %v1653
      %v1659 = vpack.c.b16 %v1656, %v1655
      %v1660 = vpack.c.b16 %v1657, %v1657
      %1661 = vrot.lane.b32.xlu0 %v1658, 80
      %v1662 = vpop.permute.xlu0 %1661
      %1663 = vrot.lane.b32.xlu0 %v1659, 80
      %v1664 = vpop.permute.xlu0 %1663
      %1665 = vrot.lane.b32.xlu0 %v1660, 80
      %v1666 = vpop.permute.xlu0 %1665
      %v1672 = vunpack.c.l.b16 %v1106
      %v1673 = vunpack.c.l.b16 %v1174
      %v1674 = vunpack.c.l.b16 %v1242
      %v1675 = vunpack.c.l.b16 %v1310
      %v1676 = vunpack.c.l.b16 %v1378
      %v1677 = vpack.c.b16 %v1673, %v1672
      %v1678 = vpack.c.b16 %v1675, %v1674
      %v1679 = vpack.c.b16 %v1676, %v1676
      %1680 = vrot.lane.b32.xlu0 %v1677, 96
      %v1681 = vpop.permute.xlu0 %1680
      %1682 = vrot.lane.b32.xlu0 %v1678, 96
      %v1683 = vpop.permute.xlu0 %1682
      %1684 = vrot.lane.b32.xlu0 %v1679, 96
      %v1685 = vpop.permute.xlu0 %1684
      %v1691 = vunpack.c.l.b16 %v1140
      %v1692 = vunpack.c.l.b16 %v1208
      %v1693 = vunpack.c.l.b16 %v1276
      %v1694 = vunpack.c.l.b16 %v1344
      %v1695 = vunpack.c.l.b16 %v1412
      %v1696 = vpack.c.b16 %v1692, %v1691
      %v1697 = vpack.c.b16 %v1694, %v1693
      %v1698 = vpack.c.b16 %v1695, %v1695
      %1699 = vrot.lane.b32.xlu0 %v1696, 112
      %v1700 = vpop.permute.xlu0 %1699
      %1701 = vrot.lane.b32.xlu0 %v1697, 112
      %v1702 = vpop.permute.xlu0 %1701
      %1703 = vrot.lane.b32.xlu0 %v1698, 112
      %v1704 = vpop.permute.xlu0 %1703
      %vm1705 = vcmask 130048
      %v1708 = vsel %vm1705, %v1423, %v1440
      %v1711 = vsel %vm1705, %v1424, %v1442
      %v1714 = vsel %vm1705, %v1425, %v1444
      %vm1715 = vcmask 261120
      %v1717 = vsel %vm1715, %v1708, %v1459
      %v1719 = vsel %vm1715, %v1711, %v1461
      %v1721 = vsel %vm1715, %v1714, %v1463
      %vm1722 = vcmask 392192
      %v1724 = vsel %vm1722, %v1717, %v1478
      %v1726 = vsel %vm1722, %v1719, %v1480
      %v1728 = vsel %vm1722, %v1721, %v1482
      %vm1729 = vcmask 523264
      %v1731 = vsel %vm1729, %v1724, %v1497
      %v1733 = vsel %vm1729, %v1726, %v1499
      %v1735 = vsel %vm1729, %v1728, %v1501
      %vm1736 = vcmask 654336
      %v1738 = vsel %vm1736, %v1731, %v1516
      %v1740 = vsel %vm1736, %v1733, %v1518
      %v1742 = vsel %vm1736, %v1735, %v1520
      %vm1743 = vcmask 785408
      %v1745 = vsel %vm1743, %v1738, %v1535
      %v1747 = vsel %vm1743, %v1740, %v1537
      %v1749 = vsel %vm1743, %v1742, %v1539
      %vm1750 = vcmask 916480
      %v1752 = vsel %vm1750, %v1745, %v1554
      %v1755 = vsel %vm1750, %v1747, %v1556
      %v1758 = vsel %vm1750, %v1749, %v1558
      %v1761 = vsel %vm1705, %v1569, %v1586
      %v1764 = vsel %vm1705, %v1570, %v1588
      %v1767 = vsel %vm1705, %v1571, %v1590
      %v1769 = vsel %vm1715, %v1761, %v1605
      %v1771 = vsel %vm1715, %v1764, %v1607
      %v1773 = vsel %vm1715, %v1767, %v1609
      %v1775 = vsel %vm1722, %v1769, %v1624
      %v1777 = vsel %vm1722, %v1771, %v1626
      %v1779 = vsel %vm1722, %v1773, %v1628
      %v1781 = vsel %vm1729, %v1775, %v1643
      %v1783 = vsel %vm1729, %v1777, %v1645
      %v1785 = vsel %vm1729, %v1779, %v1647
      %v1787 = vsel %vm1736, %v1781, %v1662
      %v1789 = vsel %vm1736, %v1783, %v1664
      %v1791 = vsel %vm1736, %v1785, %v1666
      %v1793 = vsel %vm1743, %v1787, %v1681
      %v1795 = vsel %vm1743, %v1789, %v1683
      %v1797 = vsel %vm1743, %v1791, %v1685
      %v1799 = vsel %vm1750, %v1793, %v1700
      %v1802 = vsel %vm1750, %v1795, %v1702
      %v1805 = vsel %vm1750, %v1797, %v1704
      %v1806 = vld [vmem:[%s1] sm:$0xf]
      %vm1807 = vcmask 293888
      %v1809 = vsel %vm1807, %v1806, 0
      %vm1811 = vcmask 1041408
      %v1812 = vsel %vm1811, %v1758, 0
      %v1814 = vsel %vm1811, %v1805, 0
      %1816 = vmatprep.subr.bf16.mxu0 0
      %1817 = vmatpush1.bf16.msra.mxu0 0
      %1818 = vmatprep.subr.bf16.mxu0 0
      %1819 = vmatpush1.bf16.msra.mxu0 0
      %1820 = vmatprep.subr.bf16.mxu0 0
      %1821 = vmatpush1.bf16.msra.mxu0 0
      %1822 = vmatprep.subr.bf16.mxu0 0
      %1823 = vmatpush1.bf16.msra.mxu0 0
      %1824 = vmatprep.subr.bf16.mxu0 0
      %1825 = vmatpush1.bf16.msra.mxu0 0
      %1826 = vmatprep.subr.bf16.mxu0 %v1814
      %1827 = vmatpush1.bf16.msra.mxu0 %v1812
      %1828 = vmatprep.subr.bf16.mxu0 %v1802
      %1829 = vmatpush1.bf16.msra.mxu0 %v1755
      %1830 = vmatprep.subr.bf16.mxu0 %v1799
      %1831 = vmatpush1.bf16.msra.mxu0 %v1752
      %1832 = vmatprep.subr.bf16.mxu0 0
      %1833 = vmatpush2.bf16.msra.mxu0 0
      %1834 = vmatprep.subr.bf16.mxu0 0
      %1835 = vmatpush2.bf16.msra.mxu0 0
      %1836 = vmatprep.subr.bf16.mxu0 0
      %1837 = vmatpush2.bf16.msra.mxu0 0
      %1838 = vmatprep.subr.bf16.mxu0 0
      %1839 = vmatpush2.bf16.msra.mxu0 0
      %1840 = vmatprep.subr.bf16.mxu0 0
      %1841 = vmatpush2.bf16.msra.mxu0 0
      %1842 = vmatprep.subr.bf16.mxu0 0
      %1843 = vmatpush2.bf16.msra.mxu0 0
      %1844 = vmatprep.subr.bf16.mxu0 0
      %1845 = vmatpush2.bf16.msra.mxu0 0
      %1846 = vmatprep.subr.bf16.mxu0 0
      %1847 = vmatpush2.bf16.msra.mxu0 0
      %1848 = vmatprep.mubr.bf16.mxu0 0
      %1849 = vmatmul.mubr.bf16.gmra.mxu0 %v1809
      %v1850 = vpop.f32.mrf.mxu0
      %v1851 = vadd.f32 0.0, %v1850
      %v1852 = vpop.f32.mrf.mxu0
      %v1853 = vadd.f32 0.0, %v1852
      %v1854 = vpop.f32.mrf.mxu0
      %v1855 = vpop.f32.mrf.mxu0
      %1856 = vdwg.mxu0
      %v1857 = vpack.c.bf16 %v1851, %v1851
      %v1858 = vpack.c.bf16 %v1853, %v1853
      %v1861 = vunpack.c.l.b16 %v1857
      %v1862 = vunpack.c.l.b16 %v1858
      %v1863 = vpack.c.b16 %v1862, %v1861
      %1865 = vst [vmem:[%s204] sm:$0xff] %v1863
      %v1866 = vadd.f32 %v1851, %v1853
      %1867 = vadd.xlane.f32.xlu0 %v1866
      %v1868 = vpop.xlane.xlu0 %1867
      %v1869 = vmul.f32 %v1851, %v1851
      %v1870 = vmul.f32 %v1853, %v1853
      %v1871 = vadd.f32 %v1869, %v1870
      %1872 = vadd.xlane.f32.xlu0 %v1871
      %v1873 = vpop.xlane.xlu0 %1872
      %vm1874 = vcmask 7168
      %v1875 = vsel %vm1874, %v1868, %v1873
      %vm1876 = vcmask 15360
      %1877 = vst.msk [vmem:[%s212] sm:$0xff] %vm1876, %v1875
      %s1878 = smul.u32 2, %s20
      %p1879 = scmp.lt.s32.totalorder %s19, 1
      %s1880 = scalar_select %p1879, %s19, 1
      %p1881 = scmp.lt.s32.totalorder %s1878, 1
      %s1882 = scalar_select %p1881, %s1878, 1
      %s1883 = smul.addr %s1880, 2
      %s1884 = sadd.s32 %s1882, %s1883
      %s1885 = smul.addr %s1884, 4
      %s1886 = scalar_lea.vmem %s2, %s1885
      %p1887 = scmp.lt.s32.totalorder %s19, 1
      %s1888 = scalar_select %p1887, %s19, 1
      %p1889 = scmp.lt.s32.totalorder %s20, 0
      %s1890 = scalar_select %p1889, %s20, 0
      %s1891 = sadd.s32 %s1890, %s1888
      %s1892 = smul.addr %s1891, 8
      %s1893 = scalar_lea.vmem %s3, %s1892
      // Predicated region
      $region29: #{conv_block_forward.2} parent=27 // pred_check
        %p1894 = pneg %p94
      $region30: #{conv_block_forward.2} parent=27 // pred_check_branch
        %1896 = sbr.rel (%p1894) target = $region32
      $region31: #{conv_block_forward.2} parent=27 // pred_region
        %s1897 = smul.u32 2, %s20
      $region32: #{conv_block_forward.2} parent=27 // pred_fallthru
        _
      // Predicated region
      $region33: #{conv_block_forward.2} parent=27 // pred_check
        %p1898 = pneg %p122
      $region34: #{conv_block_forward.2} parent=27 // pred_check_branch
        %1900 = sbr.rel (%p1898) target = $region36
      $region35: #{conv_block_forward.2} parent=27 // pred_region
        _
      $region36: #{conv_block_forward.2} parent=27 // pred_fallthru
        _
    $region28: #{conv_block_forward.2} parent=5 // pred_fallthru
      _
    %p1901 = scmp.le.s32.totalorder 2, %s10
    // Predicated region
    $region37: #{conv_block_forward.2} parent=5 // pred_check
      %p1902 = pneg %p1901
    $region38: #{conv_block_forward.2} parent=5 // pred_check_branch
      %1904 = sbr.rel (%p1902) target = $region40
    $region39: #{conv_block_forward.2} parent=5 // pred_region
      %s1905 = ssub.s32 %s10, 2
      // Predicated region
      $region41: #{conv_block_forward.2} parent=39 // pred_check
        %p1906 = pneg %p100
      $region42: #{conv_block_forward.2} parent=39 // pred_check_branch
        %1908 = sbr.rel (%p1906) target = $region44
      $region43: #{conv_block_forward.2} parent=39 // pred_region
        %s1909 = smul.u32 2, %s22
        %p1910 = scmp.lt.s32.totalorder %s21, 1
        %s1911 = scalar_select %p1910, %s21, 1
        %p1912 = scmp.lt.s32.totalorder %s1909, 1
        %s1913 = scalar_select %p1912, %s1909, 1
        %s1914 = smul.addr %s1911, 2
        %s1915 = sadd.s32 %s1913, %s1914
        %s1916 = smul.addr %s1915, 4
        %s1917 = scalar_lea.vmem %s2, %s1916
      $region44: #{conv_block_forward.2} parent=39 // pred_fallthru
        _
      // Predicated region
      $region45: #{conv_block_forward.2} parent=39 // pred_check
        %p1918 = pneg %p128
      $region46: #{conv_block_forward.2} parent=39 // pred_check_branch
        %1920 = sbr.rel (%p1918) target = $region48
      $region47: #{conv_block_forward.2} parent=39 // pred_region
        %p1921 = scmp.lt.s32.totalorder %s21, 1
        %s1922 = scalar_select %p1921, %s21, 1
        %p1923 = scmp.lt.s32.totalorder %s22, 0
        %s1924 = scalar_select %p1923, %s22, 0
        %s1925 = sadd.s32 %s1924, %s1922
        %s1926 = smul.addr %s1925, 8
        %s1927 = scalar_lea.vmem %s3, %s1926
      $region48: #{conv_block_forward.2} parent=39 // pred_fallthru
        _
    $region40: #{conv_block_forward.2} parent=5 // pred_fallthru
      _
  $region6: #{conv_block_forward.2} parent=0 // loop_footer
    %s14 = sadd.s32 1, %s10
  $region7: #{conv_block_forward.2} parent=0 // loop_footer_branch
    %9 = sbr.rel target = $region3
  $region8: #{conv_block_forward.2} parent=0 // loop_exit
    _

</llo_original>
